<compile_context>
chip_gen: v7x
topology: tpu7x:2x2x1
jax: 0.10.0
libtpu: 0.0.40
codegen_flags: <defaults>
</compile_context>

<pallas_src>
import numpy as np
import jax
import jax.numpy as jnp
from jax import lax
from jax.experimental import pallas as pl
from jax.experimental.pallas import tpu as pltpu

# ----- module-level hyper-parameters (the constants referenced in agent.py) ---
CONV_NUM_FILTERS = 8
CONV_FILTER_SIZE = 3
CONV_STRIDE = 2
CONV_PAD = 1
RNN_SIZE = 32
N_ACTIONS = 6

VMEM_SPEC = pl.BlockSpec(memory_space=pltpu.MemorySpace.VMEM)


# =============================== fused Pallas kernel ==========================
def _elu_f32(x):
    # ELU(alpha=1).  exp(min(x,0))-1 instead of expm1: Mosaic's expm1 lowering
    # is not guaranteed, and the <1 ulp cancellation near 0 is immaterial here.
    return jnp.where(x > 0.0, x, jnp.exp(jnp.minimum(x, 0.0)) - 1.0)


def _agent_fused_kernel(
    x_ref,
    a1_ref, b1_ref, a2_ref, b2_ref, a3_ref, b3_ref, a4_ref, b4_ref,
    h_ref, c_ref,
    wih_ref, whh_ref, blstm_ref,
    whead_ref, bhead_ref,
    heads_ref, h_out_ref, c_out_ref,
):
    """Whole Agent forward in a single kernel invocation (no grid)."""

    def conv_elu(x_bf16, a_ref, brow_ref):
        # x: (N, H*W*Cin) bf16 ; A: (H*W*Cin, Ho*Wo*Cout) bf16 ; b: (1, Ho*Wo*Cout) f32
        y = jnp.dot(x_bf16, a_ref[...], preferred_element_type=jnp.float32)
        y = y + brow_ref[...]                       # broadcasts over rows
        return _elu_f32(y).astype(jnp.bfloat16)

    x = x_ref[...]                                  # (N, H*W*Cin), bf16
    x = conv_elu(x, a1_ref, b1_ref)
    x = conv_elu(x, a2_ref, b2_ref)
    x = conv_elu(x, a3_ref, b3_ref)
    x = conv_elu(x, a4_ref, b4_ref)                 # (N, RNN_INPUT_SIZE), bf16

    H = h_ref.shape[-1]
    h_prev = h_ref[...]                             # f32
    c_prev = c_ref[...]                             # f32

    # LSTM cell: two independent small dots (no concat scratch).
    gates = (jnp.dot(x, wih_ref[...], preferred_element_type=jnp.float32)
             + jnp.dot(h_prev.astype(jnp.bfloat16), whh_ref[...],
                       preferred_element_type=jnp.float32)
             + blstm_ref[...])
    # gate order matches torch.nn.LSTMCell: [input, forget, cell(g), output]
    i = jax.nn.sigmoid(gates[:, 0:H])
    f = jax.nn.sigmoid(gates[:, H:2 * H])
    g = jnp.tanh(gates[:, 2 * H:3 * H])
    o = jax.nn.sigmoid(gates[:, 3 * H:4 * H])
    c_new = f * c_prev + i * g
    h_new = o * jnp.tanh(c_new)
    h_out_ref[...] = h_new
    c_out_ref[...] = c_new

    # fused value + policy heads: single (RNN_SIZE, 1 + n_actions) dot,
    # one lane-contiguous output (split into value/policy in the wrapper).
    heads_ref[...] = (jnp.dot(h_new.astype(jnp.bfloat16), whead_ref[...],
                              preferred_element_type=jnp.float32)
                      + bhead_ref[...])


# ============================ parameter construction ==========================
def normalized_columns_init(key, shape, std):
    # shape is torch Linear layout (out_features, in_features)
    out = jax.random.normal(key, shape, jnp.float32)
    out = out * std / jnp.sqrt(jnp.sum(out ** 2, axis=1, keepdims=True))
    return out


def init_params(key, in_channels, rnn_input_size, n_actions):
    k = jax.random.split(key, 10)
    params = {}
    K = CONV_FILTER_SIZE
    cins = [in_channels, CONV_NUM_FILTERS, CONV_NUM_FILTERS, CONV_NUM_FILTERS]
    for li, cin in enumerate(cins):
        cout = CONV_NUM_FILTERS
        fan_in = cin * K * K
        fan_out = K * K * cout
        w_bound = (6.0 / (fan_in + fan_out)) ** 0.5
        params[f"conv{li + 1}_w"] = jax.random.uniform(
            k[li], (K, K, cin, cout), jnp.float32, -w_bound, w_bound)
        params[f"conv{li + 1}_b"] = jnp.zeros((cout,), jnp.float32)

    # LSTMCell weights: torch default uniform(-1/sqrt(H), 1/sqrt(H)).
    # Both biases are explicitly zeroed by the Agent (bias_ih/bias_hh fill_(0)).
    bound = 1.0 / (RNN_SIZE ** 0.5)
    params["w_ih"] = jax.random.uniform(
        k[4], (rnn_input_size, 4 * RNN_SIZE), jnp.float32, -bound, bound)
    params["w_hh"] = jax.random.uniform(
        k[5], (RNN_SIZE, 4 * RNN_SIZE), jnp.float32, -bound, bound)
    params["b_lstm"] = jnp.zeros((4 * RNN_SIZE,), jnp.float32)

    # heads: normalized-columns init (torch layout), stored transposed for GEMM
    params["policy_w"] = normalized_columns_init(
        k[6], (n_actions, RNN_SIZE), 0.01).T
    params["policy_b"] = jnp.zeros((n_actions,), jnp.float32)
    params["value_w"] = normalized_columns_init(k[7], (1, RNN_SIZE), 1.0).T
    params["value_b"] = jnp.zeros((1,), jnp.float32)
    return params


def _conv_out(n):
    return (n + 2 * CONV_PAD - CONV_FILTER_SIZE) // CONV_STRIDE + 1


def _fold_conv_layer(w, b, H, W, Cin, chw_input):
    """Fold one stride-2/pad-1 3x3 conv into a dense (H*W*Cin, Ho*Wo*Cout) matrix.

    chw_input=True  -> input rows indexed (c, h, w) (matches NCHW flatten),
    chw_input=False -> input rows indexed (h, w, c) (matches previous layer's
                       (i, j, cout) output column order).
    Output columns are always indexed (i, j, cout).
    """
    K = CONV_FILTER_SIZE
    Ho, Wo = _conv_out(H), _conv_out(W)
    Cout = w.shape[-1]
    A = np.zeros((H * W * Cin, Ho * Wo * Cout), np.float32)
    for i in range(Ho):
        for kh in range(K):
            h = CONV_STRIDE * i + kh - CONV_PAD
            if not (0 <= h < H):
                continue
            for j in range(Wo):
                for kw in range(K):
                    wc = CONV_STRIDE * j + kw - CONV_PAD
                    if not (0 <= wc < W):
                        continue
                    c0 = (i * Wo + j) * Cout
                    for cin in range(Cin):
                        if chw_input:
                            r = (cin * H + h) * W + wc
                        else:
                            r = (h * W + wc) * Cin + cin
                        A[r, c0:c0 + Cout] += w[kh, kw, cin]
    brow = np.tile(np.asarray(b), Ho * Wo)[None, :]
    return A, brow, Ho, Wo, Cout


def prepare_fused_params(params, in_channels, height, width):
    """Precompute the constant matrices consumed by the fused kernel (once).

    All constants are batch-independent (no O(batch^2) structures) and the
    matmul operands are stored in bf16 for the native MXU path.
    """
    fused = {}
    H, W, Cin = height, width, in_channels
    for l in range(4):
        w = np.asarray(params[f"conv{l + 1}_w"])      # (3, 3, Cin, Cout), HWIO
        b = np.asarray(params[f"conv{l + 1}_b"])      # (Cout,)
        A, brow, Ho, Wo, Cout = _fold_conv_layer(w, b, H, W, Cin, chw_input=(l == 0))
        fused[f"A{l + 1}"] = jnp.asarray(A, jnp.bfloat16)
        fused[f"b{l + 1}"] = jnp.asarray(brow, jnp.float32)
        H, W, Cin = Ho, Wo, Cout

    # TODO(synk): the in-kernel flatten matches torch's x.view(-1, RNN_INPUT_SIZE)
    # only when the conv stack ends at 1x1 spatial (true for 16x16 inputs).
    assert H == 1 and W == 1, "fused kernel assumes 1x1 final spatial output"

    fused["w_ih"] = params["w_ih"].astype(jnp.bfloat16)
    fused["w_hh"] = params["w_hh"].astype(jnp.bfloat16)
    fused["b_lstm"] = params["b_lstm"].reshape(1, 4 * RNN_SIZE).astype(jnp.float32)
    fused["w_head"] = jnp.concatenate(
        [params["value_w"], params["policy_w"]], axis=1).astype(jnp.bfloat16)
    fused["b_head"] = jnp.concatenate(
        [params["value_b"], params["policy_b"]]).reshape(1, -1).astype(jnp.float32)
    return fused


# ================================ forward pass ================================
def _agent_forward_impl(fused, state_nchw, h_x, c_x):
    N = state_nchw.shape[0]
    # Layer-1's A matrix already absorbs the NCHW ordering -> plain reshape.
    x_flat = state_nchw.reshape(N, -1).astype(jnp.bfloat16)

    n_heads = fused["w_head"].shape[1]               # 1 + n_actions

    args = [x_flat]
    for l in range(4):
        args += [fused[f"A{l + 1}"], fused[f"b{l + 1}"]]
    args += [h_x, c_x,                               # inputs 9, 10 (aliased below)
             fused["w_ih"], fused["w_hh"], fused["b_lstm"],
             fused["w_head"], fused["b_head"]]

    out_shape = (
        jax.ShapeDtypeStruct((N, n_heads), jnp.float32),     # fused value|policy
        jax.ShapeDtypeStruct((N, RNN_SIZE), jnp.float32),    # h_new
        jax.ShapeDtypeStruct((N, RNN_SIZE), jnp.float32),    # c_new
    )
    heads, h_new, c_new = pl.pallas_call(
        _agent_fused_kernel,
        out_shape=out_shape,
        in_specs=[VMEM_SPEC] * len(args),
        out_specs=(VMEM_SPEC, VMEM_SPEC, VMEM_SPEC),
        # recurrent state updated in place: h_x -> h_new, c_x -> c_new
        input_output_aliases={9: 1, 10: 2},
    )(*args)

    value = heads[:, :1]
    policy = heads[:, 1:]
    return value, policy, (h_new, c_new)


agent_forward = jax.jit(_agent_forward_impl)


# ------------------------- pure-JAX reference (check) -------------------------
def _ref_forward(params, state_nchw, h_x, c_x):
    x = state_nchw
    for l in range(4):
        w = params[f"conv{l + 1}_w"]                         # (3,3,Cin,Cout) = HWIO
        x = lax.conv_general_dilated(
            x, w, window_strides=(CONV_STRIDE, CONV_STRIDE),
            padding=((CONV_PAD, CONV_PAD), (CONV_PAD, CONV_PAD)),
            dimension_numbers=("NCHW", "HWIO", "NCHW"))
        x = x + params[f"conv{l + 1}_b"][None, :, None, None]
        x = jnp.where(x > 0, x, jnp.expm1(x))                # ELU
    x = x.reshape(x.shape[0], -1)                            # torch x.view(-1, RNN_INPUT_SIZE)
    H = RNN_SIZE
    gates = x @ params["w_ih"] + h_x @ params["w_hh"] + params["b_lstm"]
    i = jax.nn.sigmoid(gates[:, 0:H]); f = jax.nn.sigmoid(gates[:, H:2 * H])
    g = jnp.tanh(gates[:, 2 * H:3 * H]); o = jax.nn.sigmoid(gates[:, 3 * H:4 * H])
    c_new = f * c_x + i * g
    h_new = o * jnp.tanh(c_new)
    value = h_new @ params["value_w"] + params["value_b"]
    policy = h_new @ params["policy_w"] + params["policy_b"]
    return value, policy, (h_new, c_new)


# ==================================== main ====================================
if __name__ == "__main__":
    key = jax.random.PRNGKey(0)
    kp, kx, kh, kc = jax.random.split(key, 4)

    N, Cin, H, W = 2, 4, 16, 16          # 16 -> 8 -> 4 -> 2 -> 1 spatial
    RNN_INPUT_SIZE = CONV_NUM_FILTERS * 1 * 1   # = 8 (flattened conv output)

    params = init_params(kp, Cin, RNN_INPUT_SIZE, N_ACTIONS)
    fused = prepare_fused_params(params, Cin, H, W)

    state = jax.random.normal(kx, (N, Cin, H, W), jnp.float32)
    h0 = jax.random.normal(kh, (N, RNN_SIZE), jnp.float32) * 0.1
    c0 = jax.random.normal(kc, (N, RNN_SIZE), jnp.float32) * 0.1

    value, policy, (h1, c1) = jax.block_until_ready(
        agent_forward(fused, state, h0, c0))

    # sanity check against an independent pure-JAX f32 reference (lax.conv path)
    rv, rp, (rh, rc) = _ref_forward(params, state, h0, c0)
    for got, ref in [(value, rv), (policy, rp), (h1, rh), (c1, rc)]:
        assert jnp.allclose(got, ref, rtol=2e-2, atol=2e-2), "mismatch vs reference"

    assert value.shape == (N, 1)
    assert policy.shape == (N, N_ACTIONS)
    assert h1.shape == (N, RNN_SIZE) and c1.shape == (N, RNN_SIZE)

    print("KERNEL_OK")
</pallas_src>

<mosaic_0001>
module attributes {stable_mosaic.version = 11 : i64} {
  func.func @_agent_fused_kernel(%arg0: memref<2x1024xbf16, #tpu.memory_space<vmem>>, %arg1: memref<1024x512xbf16, #tpu.memory_space<vmem>>, %arg2: memref<1x512xf32, #tpu.memory_space<vmem>>, %arg3: memref<512x128xbf16, #tpu.memory_space<vmem>>, %arg4: memref<1x128xf32, #tpu.memory_space<vmem>>, %arg5: memref<128x32xbf16, #tpu.memory_space<vmem>>, %arg6: memref<1x32xf32, #tpu.memory_space<vmem>>, %arg7: memref<32x8xbf16, #tpu.memory_space<vmem>>, %arg8: memref<1x8xf32, #tpu.memory_space<vmem>>, %arg9: memref<2x32xf32, #tpu.memory_space<vmem>>, %arg10: memref<2x32xf32, #tpu.memory_space<vmem>>, %arg11: memref<8x128xbf16, #tpu.memory_space<vmem>>, %arg12: memref<32x128xbf16, #tpu.memory_space<vmem>>, %arg13: memref<1x128xf32, #tpu.memory_space<vmem>>, %arg14: memref<32x7xbf16, #tpu.memory_space<vmem>>, %arg15: memref<1x7xf32, #tpu.memory_space<vmem>>, %arg16: memref<2x7xf32, #tpu.memory_space<vmem>>, %arg17: memref<2x32xf32, #tpu.memory_space<vmem>>, %arg18: memref<2x32xf32, #tpu.memory_space<vmem>>) attributes {dimension_semantics = [], scalar_prefetch = 0 : i64, scratch_operands = 0 : i64, tpu.core_type = #tpu.core_type<tc>} {
    %c0 = arith.constant 0 : index
    %c0_0 = arith.constant 0 : index
    %0 = vector.load %arg0[%c0, %c0_0] : memref<2x1024xbf16, #tpu.memory_space<vmem>>, vector<2x1024xbf16>
    %c0_1 = arith.constant 0 : index
    %c0_2 = arith.constant 0 : index
    %1 = vector.load %arg1[%c0_1, %c0_2] : memref<1024x512xbf16, #tpu.memory_space<vmem>>, vector<1024x512xbf16>
    %cst = arith.constant dense<0.000000e+00> : vector<2x512xf32>
    %2 = tpu.matmul %0, %1, %cst {dimension_numbers = #tpu.dot_dimension_numbers<[1], [0], [0], [1], [0, 0, 1, 1], [], []>} : vector<2x1024xbf16>, vector<1024x512xbf16>, vector<2x512xf32> -> vector<2x512xf32>
    %c0_3 = arith.constant 0 : index
    %c0_4 = arith.constant 0 : index
    %3 = vector.load %arg2[%c0_3, %c0_4] : memref<1x512xf32, #tpu.memory_space<vmem>>, vector<1x512xf32>
    %4 = vector.broadcast %3 : vector<1x512xf32> to vector<2x512xf32>
    %5 = arith.addf %2, %4 : vector<2x512xf32>
    %cst_5 = arith.constant 0.000000e+00 : f32
    %6 = vector.broadcast %cst_5 : f32 to vector<2x512xf32>
    %7 = arith.cmpf ogt, %5, %6 : vector<2x512xf32>
    %cst_6 = arith.constant 0.000000e+00 : f32
    %8 = vector.broadcast %cst_6 : f32 to vector<2x512xf32>
    %9 = arith.minimumf %5, %8 : vector<2x512xf32>
    %10 = math.exp %9 : vector<2x512xf32>
    %cst_7 = arith.constant 1.000000e+00 : f32
    %11 = vector.broadcast %cst_7 : f32 to vector<2x512xf32>
    %12 = arith.subf %10, %11 : vector<2x512xf32>
    %13 = arith.select %7, %5, %12 : vector<2x512xi1>, vector<2x512xf32>
    %14 = arith.truncf %13 : vector<2x512xf32> to vector<2x512xbf16>
    %c0_8 = arith.constant 0 : index
    %c0_9 = arith.constant 0 : index
    %15 = vector.load %arg3[%c0_8, %c0_9] : memref<512x128xbf16, #tpu.memory_space<vmem>>, vector<512x128xbf16>
    %cst_10 = arith.constant dense<0.000000e+00> : vector<2x128xf32>
    %16 = tpu.matmul %14, %15, %cst_10 {dimension_numbers = #tpu.dot_dimension_numbers<[1], [0], [0], [1], [0, 0, 1, 1], [], []>} : vector<2x512xbf16>, vector<512x128xbf16>, vector<2x128xf32> -> vector<2x128xf32>
    %c0_11 = arith.constant 0 : index
    %c0_12 = arith.constant 0 : index
    %17 = vector.load %arg4[%c0_11, %c0_12] : memref<1x128xf32, #tpu.memory_space<vmem>>, vector<1x128xf32>
    %18 = vector.broadcast %17 : vector<1x128xf32> to vector<2x128xf32>
    %19 = arith.addf %16, %18 : vector<2x128xf32>
    %cst_13 = arith.constant 0.000000e+00 : f32
    %20 = vector.broadcast %cst_13 : f32 to vector<2x128xf32>
    %21 = arith.cmpf ogt, %19, %20 : vector<2x128xf32>
    %cst_14 = arith.constant 0.000000e+00 : f32
    %22 = vector.broadcast %cst_14 : f32 to vector<2x128xf32>
    %23 = arith.minimumf %19, %22 : vector<2x128xf32>
    %24 = math.exp %23 : vector<2x128xf32>
    %cst_15 = arith.constant 1.000000e+00 : f32
    %25 = vector.broadcast %cst_15 : f32 to vector<2x128xf32>
    %26 = arith.subf %24, %25 : vector<2x128xf32>
    %27 = arith.select %21, %19, %26 : vector<2x128xi1>, vector<2x128xf32>
    %28 = arith.truncf %27 : vector<2x128xf32> to vector<2x128xbf16>
    %c0_16 = arith.constant 0 : index
    %c0_17 = arith.constant 0 : index
    %29 = vector.load %arg5[%c0_16, %c0_17] : memref<128x32xbf16, #tpu.memory_space<vmem>>, vector<128x32xbf16>
    %cst_18 = arith.constant dense<0.000000e+00> : vector<2x32xf32>
    %30 = tpu.matmul %28, %29, %cst_18 {dimension_numbers = #tpu.dot_dimension_numbers<[1], [0], [0], [1], [0, 0, 1, 1], [], []>} : vector<2x128xbf16>, vector<128x32xbf16>, vector<2x32xf32> -> vector<2x32xf32>
    %c0_19 = arith.constant 0 : index
    %c0_20 = arith.constant 0 : index
    %31 = vector.load %arg6[%c0_19, %c0_20] : memref<1x32xf32, #tpu.memory_space<vmem>>, vector<1x32xf32>
    %32 = vector.broadcast %31 : vector<1x32xf32> to vector<2x32xf32>
    %33 = arith.addf %30, %32 : vector<2x32xf32>
    %cst_21 = arith.constant 0.000000e+00 : f32
    %34 = vector.broadcast %cst_21 : f32 to vector<2x32xf32>
    %35 = arith.cmpf ogt, %33, %34 : vector<2x32xf32>
    %cst_22 = arith.constant 0.000000e+00 : f32
    %36 = vector.broadcast %cst_22 : f32 to vector<2x32xf32>
    %37 = arith.minimumf %33, %36 : vector<2x32xf32>
    %38 = math.exp %37 : vector<2x32xf32>
    %cst_23 = arith.constant 1.000000e+00 : f32
    %39 = vector.broadcast %cst_23 : f32 to vector<2x32xf32>
    %40 = arith.subf %38, %39 : vector<2x32xf32>
    %41 = arith.select %35, %33, %40 : vector<2x32xi1>, vector<2x32xf32>
    %42 = arith.truncf %41 : vector<2x32xf32> to vector<2x32xbf16>
    %c0_24 = arith.constant 0 : index
    %c0_25 = arith.constant 0 : index
    %43 = vector.load %arg7[%c0_24, %c0_25] : memref<32x8xbf16, #tpu.memory_space<vmem>>, vector<32x8xbf16>
    %cst_26 = arith.constant dense<0.000000e+00> : vector<2x8xf32>
    %44 = tpu.matmul %42, %43, %cst_26 {dimension_numbers = #tpu.dot_dimension_numbers<[1], [0], [0], [1], [0, 0, 1, 1], [], []>} : vector<2x32xbf16>, vector<32x8xbf16>, vector<2x8xf32> -> vector<2x8xf32>
    %c0_27 = arith.constant 0 : index
    %c0_28 = arith.constant 0 : index
    %45 = vector.load %arg8[%c0_27, %c0_28] : memref<1x8xf32, #tpu.memory_space<vmem>>, vector<1x8xf32>
    %46 = vector.broadcast %45 : vector<1x8xf32> to vector<2x8xf32>
    %47 = arith.addf %44, %46 : vector<2x8xf32>
    %cst_29 = arith.constant 0.000000e+00 : f32
    %48 = vector.broadcast %cst_29 : f32 to vector<2x8xf32>
    %49 = arith.cmpf ogt, %47, %48 : vector<2x8xf32>
    %cst_30 = arith.constant 0.000000e+00 : f32
    %50 = vector.broadcast %cst_30 : f32 to vector<2x8xf32>
    %51 = arith.minimumf %47, %50 : vector<2x8xf32>
    %52 = math.exp %51 : vector<2x8xf32>
    %cst_31 = arith.constant 1.000000e+00 : f32
    %53 = vector.broadcast %cst_31 : f32 to vector<2x8xf32>
    %54 = arith.subf %52, %53 : vector<2x8xf32>
    %55 = arith.select %49, %47, %54 : vector<2x8xi1>, vector<2x8xf32>
    %56 = arith.truncf %55 : vector<2x8xf32> to vector<2x8xbf16>
    %c0_32 = arith.constant 0 : index
    %c0_33 = arith.constant 0 : index
    %57 = vector.load %arg9[%c0_32, %c0_33] : memref<2x32xf32, #tpu.memory_space<vmem>>, vector<2x32xf32>
    %c0_34 = arith.constant 0 : index
    %c0_35 = arith.constant 0 : index
    %58 = vector.load %arg10[%c0_34, %c0_35] : memref<2x32xf32, #tpu.memory_space<vmem>>, vector<2x32xf32>
    %c0_36 = arith.constant 0 : index
    %c0_37 = arith.constant 0 : index
    %59 = vector.load %arg11[%c0_36, %c0_37] : memref<8x128xbf16, #tpu.memory_space<vmem>>, vector<8x128xbf16>
    %cst_38 = arith.constant dense<0.000000e+00> : vector<2x128xf32>
    %60 = tpu.matmul %56, %59, %cst_38 {dimension_numbers = #tpu.dot_dimension_numbers<[1], [0], [0], [1], [0, 0, 1, 1], [], []>} : vector<2x8xbf16>, vector<8x128xbf16>, vector<2x128xf32> -> vector<2x128xf32>
    %61 = arith.truncf %57 : vector<2x32xf32> to vector<2x32xbf16>
    %c0_39 = arith.constant 0 : index
    %c0_40 = arith.constant 0 : index
    %62 = vector.load %arg12[%c0_39, %c0_40] : memref<32x128xbf16, #tpu.memory_space<vmem>>, vector<32x128xbf16>
    %cst_41 = arith.constant dense<0.000000e+00> : vector<2x128xf32>
    %63 = tpu.matmul %61, %62, %cst_41 {dimension_numbers = #tpu.dot_dimension_numbers<[1], [0], [0], [1], [0, 0, 1, 1], [], []>} : vector<2x32xbf16>, vector<32x128xbf16>, vector<2x128xf32> -> vector<2x128xf32>
    %64 = arith.addf %60, %63 : vector<2x128xf32>
    %c0_42 = arith.constant 0 : index
    %c0_43 = arith.constant 0 : index
    %65 = vector.load %arg13[%c0_42, %c0_43] : memref<1x128xf32, #tpu.memory_space<vmem>>, vector<1x128xf32>
    %66 = vector.broadcast %65 : vector<1x128xf32> to vector<2x128xf32>
    %67 = arith.addf %64, %66 : vector<2x128xf32>
    %68 = vector.extract_strided_slice %67 {offsets = [0, 0], sizes = [2, 32], strides = [1, 1]} : vector<2x128xf32> to vector<2x32xf32>
    %69 = arith.negf %68 : vector<2x32xf32>
    %70 = math.exp %69 : vector<2x32xf32>
    %cst_44 = arith.constant 1.000000e+00 : f32
    %71 = vector.broadcast %cst_44 : f32 to vector<2x32xf32>
    %72 = arith.addf %71, %70 : vector<2x32xf32>
    %73 = arith.divf %71, %72 : vector<2x32xf32>
    %74 = vector.extract_strided_slice %67 {offsets = [0, 32], sizes = [2, 32], strides = [1, 1]} : vector<2x128xf32> to vector<2x32xf32>
    %75 = arith.negf %74 : vector<2x32xf32>
    %76 = math.exp %75 : vector<2x32xf32>
    %cst_45 = arith.constant 1.000000e+00 : f32
    %77 = vector.broadcast %cst_45 : f32 to vector<2x32xf32>
    %78 = arith.addf %77, %76 : vector<2x32xf32>
    %79 = arith.divf %77, %78 : vector<2x32xf32>
    %80 = vector.extract_strided_slice %67 {offsets = [0, 64], sizes = [2, 32], strides = [1, 1]} : vector<2x128xf32> to vector<2x32xf32>
    %81 = math.tanh %80 : vector<2x32xf32>
    %82 = vector.extract_strided_slice %67 {offsets = [0, 96], sizes = [2, 32], strides = [1, 1]} : vector<2x128xf32> to vector<2x32xf32>
    %83 = arith.negf %82 : vector<2x32xf32>
    %84 = math.exp %83 : vector<2x32xf32>
    %cst_46 = arith.constant 1.000000e+00 : f32
    %85 = vector.broadcast %cst_46 : f32 to vector<2x32xf32>
    %86 = arith.addf %85, %84 : vector<2x32xf32>
    %87 = arith.divf %85, %86 : vector<2x32xf32>
    %88 = arith.mulf %79, %58 : vector<2x32xf32>
    %89 = arith.mulf %73, %81 : vector<2x32xf32>
    %90 = arith.addf %88, %89 : vector<2x32xf32>
    %91 = math.tanh %90 : vector<2x32xf32>
    %92 = arith.mulf %87, %91 : vector<2x32xf32>
    %c0_47 = arith.constant 0 : index
    %c0_48 = arith.constant 0 : index
    %93 = vector.load %arg17[%c0_47, %c0_48] : memref<2x32xf32, #tpu.memory_space<vmem>>, vector<2x32xf32>
    tpu.vector_store %arg17[%c0_47, %c0_48], %92 {strides = array<i32>} : memref<2x32xf32, #tpu.memory_space<vmem>>, vector<2x32xf32>,
    %c0_49 = arith.constant 0 : index
    %c0_50 = arith.constant 0 : index
    %94 = vector.load %arg18[%c0_49, %c0_50] : memref<2x32xf32, #tpu.memory_space<vmem>>, vector<2x32xf32>
    tpu.vector_store %arg18[%c0_49, %c0_50], %90 {strides = array<i32>} : memref<2x32xf32, #tpu.memory_space<vmem>>, vector<2x32xf32>,
    %95 = arith.truncf %92 : vector<2x32xf32> to vector<2x32xbf16>
    %c0_51 = arith.constant 0 : index
    %c0_52 = arith.constant 0 : index
    %96 = vector.load %arg14[%c0_51, %c0_52] : memref<32x7xbf16, #tpu.memory_space<vmem>>, vector<32x7xbf16>
    %cst_53 = arith.constant dense<0.000000e+00> : vector<2x7xf32>
    %97 = tpu.matmul %95, %96, %cst_53 {dimension_numbers = #tpu.dot_dimension_numbers<[1], [0], [0], [1], [0, 0, 1, 1], [], []>} : vector<2x32xbf16>, vector<32x7xbf16>, vector<2x7xf32> -> vector<2x7xf32>
    %c0_54 = arith.constant 0 : index
    %c0_55 = arith.constant 0 : index
    %98 = vector.load %arg15[%c0_54, %c0_55] : memref<1x7xf32, #tpu.memory_space<vmem>>, vector<1x7xf32>
    %99 = vector.broadcast %98 : vector<1x7xf32> to vector<2x7xf32>
    %100 = arith.addf %97, %99 : vector<2x7xf32>
    %c0_56 = arith.constant 0 : index
    %c0_57 = arith.constant 0 : index
    %101 = vector.load %arg16[%c0_56, %c0_57] : memref<2x7xf32, #tpu.memory_space<vmem>>, vector<2x7xf32>
    tpu.vector_store %arg16[%c0_56, %c0_57], %100 {strides = array<i32>} : memref<2x7xf32, #tpu.memory_space<vmem>>, vector<2x7xf32>,
    return
  }
}

</mosaic_0001>

<llo_original>
// kernel: _agent_forward_impl.1
$region0: #{_agent_forward_impl.1}
  #allocation0 [shape = 'u32[]', space=smem, size = 0x4, offset = 0x4, fixed_abs, tag = 'smem constant byte address 0x4 - core index']
  #allocation1 [shape = 'u32[144,128]{1,0:T(1,128)}', space=vmem, size = 0x12000, scoped, tag = 'internal scratch']
  %s0 = inlined_call_operand.vmem [shape: bf16[2,1024], index: 0, kind: input, shape index: {}]
  %s1 = inlined_call_operand.hbm [shape: bf16[1024,512], index: 1, kind: input, shape index: {}]
  %s2 = inlined_call_operand.vmem [shape: f32[1,512], index: 2, kind: input, shape index: {}]
  %s3 = inlined_call_operand.vmem [shape: bf16[512,128], index: 3, kind: input, shape index: {}]
  %s4 = inlined_call_operand.vmem [shape: f32[1,128], index: 4, kind: input, shape index: {}]
  %s5 = inlined_call_operand.vmem [shape: bf16[128,32], index: 5, kind: input, shape index: {}]
  %s6 = inlined_call_operand.vmem [shape: f32[1,32], index: 6, kind: input, shape index: {}]
  %s7 = inlined_call_operand.vmem [shape: bf16[32,8], index: 7, kind: input, shape index: {}]
  %s8 = inlined_call_operand.vmem [shape: f32[1,8], index: 8, kind: input, shape index: {}]
  %s9 = inlined_call_operand.vmem [shape: f32[2,32], index: 9, kind: input, shape index: {}, may-alias: {9,17}]
  %s10 = inlined_call_operand.vmem [shape: f32[2,32], index: 10, kind: input, shape index: {}, may-alias: {10,18}]
  %s11 = inlined_call_operand.vmem [shape: bf16[8,128], index: 11, kind: input, shape index: {}]
  %s12 = inlined_call_operand.vmem [shape: bf16[32,128], index: 12, kind: input, shape index: {}]
  %s13 = inlined_call_operand.vmem [shape: f32[1,128], index: 13, kind: input, shape index: {}]
  %s14 = inlined_call_operand.vmem [shape: bf16[32,7], index: 14, kind: input, shape index: {}]
  %s15 = inlined_call_operand.vmem [shape: f32[1,7], index: 15, kind: input, shape index: {}]
  %s16 = inlined_call_operand.vmem [shape: f32[2,7], index: 16, kind: output, shape index: {0}]
  %s17 = inlined_call_operand.vmem [shape: f32[2,32], index: 17, kind: output, shape index: {1}, may-alias: {9,17}]
  %s18 = inlined_call_operand.vmem [shape: f32[2,32], index: 18, kind: output, shape index: {2}, may-alias: {10,18}]
  %19 = xla_tuple %s16, %s17, %s18
  %s20 = sld [smem:[#allocation0]]
  $region94: #{_agent_forward_impl.1} parent=0
    _
  %s22 = ssub.s32 1, %s20
  %s23 = scalar_select 0, %s22, %s20
  $region1: #{_agent_forward_impl.1} parent=0
    #allocation2 [shape = 'u8[1048576]{0}', space=vmem, size = 0x100000, scoped, tag = 'input window, operand 1, single buffered']
    #allocation3 [shape = 's32[1]{0}', space=sflag, size = 0x4, scoped, tag = 'scoped memory for _agent_forward_impl.1']
    %24 = vsyncpa [#allocation3], 0
    // Predicated region
    $region2: #{_agent_forward_impl.1} parent=1 // pred_check
      _
    $region3: #{_agent_forward_impl.1} parent=1 // pred_check_branch
      %26 = sbr.rel (0) target = $region5
    $region4: #{_agent_forward_impl.1} parent=1 // pred_region
      _
    $region5: #{_agent_forward_impl.1} parent=1 // pred_fallthru
      _
    // Predicated region
    $region6: #{_agent_forward_impl.1} parent=1 // pred_check
      _
    $region7: #{_agent_forward_impl.1} parent=1 // pred_check_branch
      %28 = sbr.rel (0) target = $region9
    $region8: #{_agent_forward_impl.1} parent=1 // pred_region
      %s30 = ssub.s32 32768, 32768
      %31 = vsyncadd [#allocation3], %s30
      %s32 = sshll.u32 [#allocation2], 4
      %s33 = int_to_ptr.vmem [resolvable:$true] %s32
      %38 = dma.hbm_to_vmem [thread:$0]  %s1, 32768, %s33, [#allocation3], 256, 256, 16
    $region9: #{_agent_forward_impl.1} parent=1 // pred_fallthru
      _
    // Predicated region
    $region10: #{_agent_forward_impl.1} parent=1 // pred_check
      _
    $region11: #{_agent_forward_impl.1} parent=1 // pred_check_branch
      %40 = sbr.rel (0) target = $region13
    $region12: #{_agent_forward_impl.1} parent=1 // pred_region
      _
    $region13: #{_agent_forward_impl.1} parent=1 // pred_fallthru
      _
    // Predicated region
    $region14: #{_agent_forward_impl.1} parent=1 // pred_check
      _
    $region15: #{_agent_forward_impl.1} parent=1 // pred_check_branch
      %42 = sbr.rel (0) target = $region17
    $region16: #{_agent_forward_impl.1} parent=1 // pred_region
      _
    $region17: #{_agent_forward_impl.1} parent=1 // pred_fallthru
      _
    // Predicated region
    $region18: #{_agent_forward_impl.1} parent=1 // pred_check
      _
    $region19: #{_agent_forward_impl.1} parent=1 // pred_check_branch
      %44 = sbr.rel (0) target = $region21
    $region20: #{_agent_forward_impl.1} parent=1 // pred_region
      _
    $region21: #{_agent_forward_impl.1} parent=1 // pred_fallthru
      _
    // Predicated region
    $region22: #{_agent_forward_impl.1} parent=1 // pred_check
      _
    $region23: #{_agent_forward_impl.1} parent=1 // pred_check_branch
      %46 = sbr.rel (0) target = $region25
    $region24: #{_agent_forward_impl.1} parent=1 // pred_region
      _
    $region25: #{_agent_forward_impl.1} parent=1 // pred_fallthru
      _
    // Predicated region
    $region26: #{_agent_forward_impl.1} parent=1 // pred_check
      _
    $region27: #{_agent_forward_impl.1} parent=1 // pred_check_branch
      %48 = sbr.rel (0) target = $region29
    $region28: #{_agent_forward_impl.1} parent=1 // pred_region
      _
    $region29: #{_agent_forward_impl.1} parent=1 // pred_fallthru
      _
    // Predicated region
    $region30: #{_agent_forward_impl.1} parent=1 // pred_check
      _
    $region31: #{_agent_forward_impl.1} parent=1 // pred_check_branch
      %50 = sbr.rel (0) target = $region33
    $region32: #{_agent_forward_impl.1} parent=1 // pred_region
      _
    $region33: #{_agent_forward_impl.1} parent=1 // pred_fallthru
      _
    // Predicated region
    $region34: #{_agent_forward_impl.1} parent=1 // pred_check
      _
    $region35: #{_agent_forward_impl.1} parent=1 // pred_check_branch
      %52 = sbr.rel (0) target = $region37
    $region36: #{_agent_forward_impl.1} parent=1 // pred_region
      _
    $region37: #{_agent_forward_impl.1} parent=1 // pred_fallthru
      _
    // Predicated region
    $region38: #{_agent_forward_impl.1} parent=1 // pred_check
      _
    $region39: #{_agent_forward_impl.1} parent=1 // pred_check_branch
      %54 = sbr.rel (0) target = $region41
    $region40: #{_agent_forward_impl.1} parent=1 // pred_region
      _
    $region41: #{_agent_forward_impl.1} parent=1 // pred_fallthru
      _
    // Predicated region
    $region42: #{_agent_forward_impl.1} parent=1 // pred_check
      _
    $region43: #{_agent_forward_impl.1} parent=1 // pred_check_branch
      %56 = sbr.rel (0) target = $region45
    $region44: #{_agent_forward_impl.1} parent=1 // pred_region
      _
    $region45: #{_agent_forward_impl.1} parent=1 // pred_fallthru
      _
    // Predicated region
    $region46: #{_agent_forward_impl.1} parent=1 // pred_check
      _
    $region47: #{_agent_forward_impl.1} parent=1 // pred_check_branch
      %58 = sbr.rel (0) target = $region49
    $region48: #{_agent_forward_impl.1} parent=1 // pred_region
      _
    $region49: #{_agent_forward_impl.1} parent=1 // pred_fallthru
      _
    // Predicated region
    $region50: #{_agent_forward_impl.1} parent=1 // pred_check
      _
    $region51: #{_agent_forward_impl.1} parent=1 // pred_check_branch
      %60 = sbr.rel (0) target = $region53
    $region52: #{_agent_forward_impl.1} parent=1 // pred_region
      _
    $region53: #{_agent_forward_impl.1} parent=1 // pred_fallthru
      _
    // Predicated region
    $region54: #{_agent_forward_impl.1} parent=1 // pred_check
      _
    $region55: #{_agent_forward_impl.1} parent=1 // pred_check_branch
      %62 = sbr.rel (0) target = $region57
    $region56: #{_agent_forward_impl.1} parent=1 // pred_region
      _
    $region57: #{_agent_forward_impl.1} parent=1 // pred_fallthru
      _
    // Predicated region
    $region58: #{_agent_forward_impl.1} parent=1 // pred_check
      _
    $region59: #{_agent_forward_impl.1} parent=1 // pred_check_branch
      %64 = sbr.rel (0) target = $region61
    $region60: #{_agent_forward_impl.1} parent=1 // pred_region
      _
    $region61: #{_agent_forward_impl.1} parent=1 // pred_fallthru
      _
    // Predicated region
    $region62: #{_agent_forward_impl.1} parent=1 // pred_check
      _
    $region63: #{_agent_forward_impl.1} parent=1 // pred_check_branch
      %66 = sbr.rel (0) target = $region65
    $region64: #{_agent_forward_impl.1} parent=1 // pred_region
      _
    $region65: #{_agent_forward_impl.1} parent=1 // pred_fallthru
      _
    // Predicated region
    $region66: #{_agent_forward_impl.1} parent=1 // pred_check
      _
    $region67: #{_agent_forward_impl.1} parent=1 // pred_check_branch
      %68 = sbr.rel (0) target = $region69
    $region68: #{_agent_forward_impl.1} parent=1 // pred_region
      %69 = dma.done [#allocation3], 32768
    $region69: #{_agent_forward_impl.1} parent=1 // pred_fallthru
      _
    %v71 = vld [vmem:[%s0] sm:$0xff]
    %v72 = vld [vmem:[#allocation2] sm:$0xff]
    %v73 = vld [vmem:[#allocation2 + $0x8] sm:$0xff]
    %v74 = vld [vmem:[#allocation2 + $0x10] sm:$0xff]
    %v75 = vld [vmem:[#allocation2 + $0x18] sm:$0xff]
    %v76 = vld [vmem:[#allocation2 + $0x20] sm:$0xff]
    %v77 = vld [vmem:[#allocation2 + $0x28] sm:$0xff]
    %v78 = vld [vmem:[#allocation2 + $0x30] sm:$0xff]
    %v79 = vld [vmem:[#allocation2 + $0x38] sm:$0xff]
    %v80 = vld [vmem:[#allocation2 + $0x40] sm:$0xff]
    %v81 = vld [vmem:[#allocation2 + $0x48] sm:$0xff]
    %v82 = vld [vmem:[#allocation2 + $0x50] sm:$0xff]
    %v83 = vld [vmem:[#allocation2 + $0x58] sm:$0xff]
    %v84 = vld [vmem:[#allocation2 + $0x60] sm:$0xff]
    %v85 = vld [vmem:[#allocation2 + $0x68] sm:$0xff]
    %v86 = vld [vmem:[#allocation2 + $0x70] sm:$0xff]
    %v87 = vld [vmem:[#allocation2 + $0x78] sm:$0xff]
    %v88 = vld [vmem:[#allocation2 + $0x80] sm:$0xff]
    %v89 = vld [vmem:[#allocation2 + $0x88] sm:$0xff]
    %v90 = vld [vmem:[#allocation2 + $0x90] sm:$0xff]
    %v91 = vld [vmem:[#allocation2 + $0x98] sm:$0xff]
    %v92 = vld [vmem:[#allocation2 + $0xa0] sm:$0xff]
    %v93 = vld [vmem:[#allocation2 + $0xa8] sm:$0xff]
    %v94 = vld [vmem:[#allocation2 + $0xb0] sm:$0xff]
    %v95 = vld [vmem:[#allocation2 + $0xb8] sm:$0xff]
    %v96 = vld [vmem:[#allocation2 + $0xc0] sm:$0xff]
    %v97 = vld [vmem:[#allocation2 + $0xc8] sm:$0xff]
    %v98 = vld [vmem:[#allocation2 + $0xd0] sm:$0xff]
    %v99 = vld [vmem:[#allocation2 + $0xd8] sm:$0xff]
    %v100 = vld [vmem:[#allocation2 + $0xe0] sm:$0xff]
    %v101 = vld [vmem:[#allocation2 + $0xe8] sm:$0xff]
    %v102 = vld [vmem:[#allocation2 + $0xf0] sm:$0xff]
    %v103 = vld [vmem:[#allocation2 + $0xf8] sm:$0xff]
    %v104 = vld [vmem:[#allocation2 + $0x100] sm:$0xff]
    %v105 = vld [vmem:[#allocation2 + $0x108] sm:$0xff]
    %v106 = vld [vmem:[#allocation2 + $0x110] sm:$0xff]
    %v107 = vld [vmem:[#allocation2 + $0x118] sm:$0xff]
    %v108 = vld [vmem:[#allocation2 + $0x120] sm:$0xff]
    %v109 = vld [vmem:[#allocation2 + $0x128] sm:$0xff]
    %v110 = vld [vmem:[#allocation2 + $0x130] sm:$0xff]
    %v111 = vld [vmem:[#allocation2 + $0x138] sm:$0xff]
    %v112 = vld [vmem:[#allocation2 + $0x140] sm:$0xff]
    %v113 = vld [vmem:[#allocation2 + $0x148] sm:$0xff]
    %v114 = vld [vmem:[#allocation2 + $0x150] sm:$0xff]
    %v115 = vld [vmem:[#allocation2 + $0x158] sm:$0xff]
    %v116 = vld [vmem:[#allocation2 + $0x160] sm:$0xff]
    %v117 = vld [vmem:[#allocation2 + $0x168] sm:$0xff]
    %v118 = vld [vmem:[#allocation2 + $0x170] sm:$0xff]
    %v119 = vld [vmem:[#allocation2 + $0x178] sm:$0xff]
    %v120 = vld [vmem:[#allocation2 + $0x180] sm:$0xff]
    %v121 = vld [vmem:[#allocation2 + $0x188] sm:$0xff]
    %v122 = vld [vmem:[#allocation2 + $0x190] sm:$0xff]
    %v123 = vld [vmem:[#allocation2 + $0x198] sm:$0xff]
    %v124 = vld [vmem:[#allocation2 + $0x1a0] sm:$0xff]
    %v125 = vld [vmem:[#allocation2 + $0x1a8] sm:$0xff]
    %v126 = vld [vmem:[#allocation2 + $0x1b0] sm:$0xff]
    %v127 = vld [vmem:[#allocation2 + $0x1b8] sm:$0xff]
    %v128 = vld [vmem:[#allocation2 + $0x1c0] sm:$0xff]
    %v129 = vld [vmem:[#allocation2 + $0x1c8] sm:$0xff]
    %v130 = vld [vmem:[#allocation2 + $0x1d0] sm:$0xff]
    %v131 = vld [vmem:[#allocation2 + $0x1d8] sm:$0xff]
    %v132 = vld [vmem:[#allocation2 + $0x1e0] sm:$0xff]
    %v133 = vld [vmem:[#allocation2 + $0x1e8] sm:$0xff]
    %v134 = vld [vmem:[#allocation2 + $0x1f0] sm:$0xff]
    %v135 = vld [vmem:[#allocation2 + $0x1f8] sm:$0xff]
    %v136 = vld [vmem:[#allocation2 + $0x200] sm:$0xff]
    %v137 = vld [vmem:[#allocation2 + $0x208] sm:$0xff]
    %v138 = vld [vmem:[#allocation2 + $0x210] sm:$0xff]
    %v139 = vld [vmem:[#allocation2 + $0x218] sm:$0xff]
    %v140 = vld [vmem:[#allocation2 + $0x220] sm:$0xff]
    %v141 = vld [vmem:[#allocation2 + $0x228] sm:$0xff]
    %v142 = vld [vmem:[#allocation2 + $0x230] sm:$0xff]
    %v143 = vld [vmem:[#allocation2 + $0x238] sm:$0xff]
    %v144 = vld [vmem:[#allocation2 + $0x240] sm:$0xff]
    %v145 = vld [vmem:[#allocation2 + $0x248] sm:$0xff]
    %v146 = vld [vmem:[#allocation2 + $0x250] sm:$0xff]
    %v147 = vld [vmem:[#allocation2 + $0x258] sm:$0xff]
    %v148 = vld [vmem:[#allocation2 + $0x260] sm:$0xff]
    %v149 = vld [vmem:[#allocation2 + $0x268] sm:$0xff]
    %v150 = vld [vmem:[#allocation2 + $0x270] sm:$0xff]
    %v151 = vld [vmem:[#allocation2 + $0x278] sm:$0xff]
    %v152 = vld [vmem:[#allocation2 + $0x280] sm:$0xff]
    %v153 = vld [vmem:[#allocation2 + $0x288] sm:$0xff]
    %v154 = vld [vmem:[#allocation2 + $0x290] sm:$0xff]
    %v155 = vld [vmem:[#allocation2 + $0x298] sm:$0xff]
    %v156 = vld [vmem:[#allocation2 + $0x2a0] sm:$0xff]
    %v157 = vld [vmem:[#allocation2 + $0x2a8] sm:$0xff]
    %v158 = vld [vmem:[#allocation2 + $0x2b0] sm:$0xff]
    %v159 = vld [vmem:[#allocation2 + $0x2b8] sm:$0xff]
    %v160 = vld [vmem:[#allocation2 + $0x2c0] sm:$0xff]
    %v161 = vld [vmem:[#allocation2 + $0x2c8] sm:$0xff]
    %v162 = vld [vmem:[#allocation2 + $0x2d0] sm:$0xff]
    %v163 = vld [vmem:[#allocation2 + $0x2d8] sm:$0xff]
    %v164 = vld [vmem:[#allocation2 + $0x2e0] sm:$0xff]
    %v165 = vld [vmem:[#allocation2 + $0x2e8] sm:$0xff]
    %v166 = vld [vmem:[#allocation2 + $0x2f0] sm:$0xff]
    %v167 = vld [vmem:[#allocation2 + $0x2f8] sm:$0xff]
    %v168 = vld [vmem:[#allocation2 + $0x300] sm:$0xff]
    %v169 = vld [vmem:[#allocation2 + $0x308] sm:$0xff]
    %v170 = vld [vmem:[#allocation2 + $0x310] sm:$0xff]
    %v171 = vld [vmem:[#allocation2 + $0x318] sm:$0xff]
    %v172 = vld [vmem:[#allocation2 + $0x320] sm:$0xff]
    %v173 = vld [vmem:[#allocation2 + $0x328] sm:$0xff]
    %v174 = vld [vmem:[#allocation2 + $0x330] sm:$0xff]
    %v175 = vld [vmem:[#allocation2 + $0x338] sm:$0xff]
    %v176 = vld [vmem:[#allocation2 + $0x340] sm:$0xff]
    %v177 = vld [vmem:[#allocation2 + $0x348] sm:$0xff]
    %v178 = vld [vmem:[#allocation2 + $0x350] sm:$0xff]
    %v179 = vld [vmem:[#allocation2 + $0x358] sm:$0xff]
    %v180 = vld [vmem:[#allocation2 + $0x360] sm:$0xff]
    %v181 = vld [vmem:[#allocation2 + $0x368] sm:$0xff]
    %v182 = vld [vmem:[#allocation2 + $0x370] sm:$0xff]
    %v183 = vld [vmem:[#allocation2 + $0x378] sm:$0xff]
    %v184 = vld [vmem:[#allocation2 + $0x380] sm:$0xff]
    %v185 = vld [vmem:[#allocation2 + $0x388] sm:$0xff]
    %v186 = vld [vmem:[#allocation2 + $0x390] sm:$0xff]
    %v187 = vld [vmem:[#allocation2 + $0x398] sm:$0xff]
    %v188 = vld [vmem:[#allocation2 + $0x3a0] sm:$0xff]
    %v189 = vld [vmem:[#allocation2 + $0x3a8] sm:$0xff]
    %v190 = vld [vmem:[#allocation2 + $0x3b0] sm:$0xff]
    %v191 = vld [vmem:[#allocation2 + $0x3b8] sm:$0xff]
    %v192 = vld [vmem:[#allocation2 + $0x3c0] sm:$0xff]
    %v193 = vld [vmem:[#allocation2 + $0x3c8] sm:$0xff]
    %v194 = vld [vmem:[#allocation2 + $0x3d0] sm:$0xff]
    %v195 = vld [vmem:[#allocation2 + $0x3d8] sm:$0xff]
    %v196 = vld [vmem:[#allocation2 + $0x3e0] sm:$0xff]
    %v197 = vld [vmem:[#allocation2 + $0x3e8] sm:$0xff]
    %v198 = vld [vmem:[#allocation2 + $0x3f0] sm:$0xff]
    %v199 = vld [vmem:[#allocation2 + $0x3f8] sm:$0xff]
    %v200 = vld [vmem:[#allocation2 + $0x400] sm:$0xff]
    %v201 = vld [vmem:[#allocation2 + $0x408] sm:$0xff]
    %v202 = vld [vmem:[#allocation2 + $0x410] sm:$0xff]
    %v203 = vld [vmem:[#allocation2 + $0x418] sm:$0xff]
    %v204 = vld [vmem:[#allocation2 + $0x420] sm:$0xff]
    %v205 = vld [vmem:[#allocation2 + $0x428] sm:$0xff]
    %v206 = vld [vmem:[#allocation2 + $0x430] sm:$0xff]
    %v207 = vld [vmem:[#allocation2 + $0x438] sm:$0xff]
    %v208 = vld [vmem:[#allocation2 + $0x440] sm:$0xff]
    %v209 = vld [vmem:[#allocation2 + $0x448] sm:$0xff]
    %v210 = vld [vmem:[#allocation2 + $0x450] sm:$0xff]
    %v211 = vld [vmem:[#allocation2 + $0x458] sm:$0xff]
    %v212 = vld [vmem:[#allocation2 + $0x460] sm:$0xff]
    %v213 = vld [vmem:[#allocation2 + $0x468] sm:$0xff]
    %v214 = vld [vmem:[#allocation2 + $0x470] sm:$0xff]
    %v215 = vld [vmem:[#allocation2 + $0x478] sm:$0xff]
    %v216 = vld [vmem:[#allocation2 + $0x480] sm:$0xff]
    %v217 = vld [vmem:[#allocation2 + $0x488] sm:$0xff]
    %v218 = vld [vmem:[#allocation2 + $0x490] sm:$0xff]
    %v219 = vld [vmem:[#allocation2 + $0x498] sm:$0xff]
    %v220 = vld [vmem:[#allocation2 + $0x4a0] sm:$0xff]
    %v221 = vld [vmem:[#allocation2 + $0x4a8] sm:$0xff]
    %v222 = vld [vmem:[#allocation2 + $0x4b0] sm:$0xff]
    %v223 = vld [vmem:[#allocation2 + $0x4b8] sm:$0xff]
    %v224 = vld [vmem:[#allocation2 + $0x4c0] sm:$0xff]
    %v225 = vld [vmem:[#allocation2 + $0x4c8] sm:$0xff]
    %v226 = vld [vmem:[#allocation2 + $0x4d0] sm:$0xff]
    %v227 = vld [vmem:[#allocation2 + $0x4d8] sm:$0xff]
    %v228 = vld [vmem:[#allocation2 + $0x4e0] sm:$0xff]
    %v229 = vld [vmem:[#allocation2 + $0x4e8] sm:$0xff]
    %v230 = vld [vmem:[#allocation2 + $0x4f0] sm:$0xff]
    %v231 = vld [vmem:[#allocation2 + $0x4f8] sm:$0xff]
    %v232 = vld [vmem:[#allocation2 + $0x500] sm:$0xff]
    %v233 = vld [vmem:[#allocation2 + $0x508] sm:$0xff]
    %v234 = vld [vmem:[#allocation2 + $0x510] sm:$0xff]
    %v235 = vld [vmem:[#allocation2 + $0x518] sm:$0xff]
    %v236 = vld [vmem:[#allocation2 + $0x520] sm:$0xff]
    %v237 = vld [vmem:[#allocation2 + $0x528] sm:$0xff]
    %v238 = vld [vmem:[#allocation2 + $0x530] sm:$0xff]
    %v239 = vld [vmem:[#allocation2 + $0x538] sm:$0xff]
    %v240 = vld [vmem:[#allocation2 + $0x540] sm:$0xff]
    %v241 = vld [vmem:[#allocation2 + $0x548] sm:$0xff]
    %v242 = vld [vmem:[#allocation2 + $0x550] sm:$0xff]
    %v243 = vld [vmem:[#allocation2 + $0x558] sm:$0xff]
    %v244 = vld [vmem:[#allocation2 + $0x560] sm:$0xff]
    %v245 = vld [vmem:[#allocation2 + $0x568] sm:$0xff]
    %v246 = vld [vmem:[#allocation2 + $0x570] sm:$0xff]
    %v247 = vld [vmem:[#allocation2 + $0x578] sm:$0xff]
    %v248 = vld [vmem:[#allocation2 + $0x580] sm:$0xff]
    %v249 = vld [vmem:[#allocation2 + $0x588] sm:$0xff]
    %v250 = vld [vmem:[#allocation2 + $0x590] sm:$0xff]
    %v251 = vld [vmem:[#allocation2 + $0x598] sm:$0xff]
    %v252 = vld [vmem:[#allocation2 + $0x5a0] sm:$0xff]
    %v253 = vld [vmem:[#allocation2 + $0x5a8] sm:$0xff]
    %v254 = vld [vmem:[#allocation2 + $0x5b0] sm:$0xff]
    %v255 = vld [vmem:[#allocation2 + $0x5b8] sm:$0xff]
    %v256 = vld [vmem:[#allocation2 + $0x5c0] sm:$0xff]
    %v257 = vld [vmem:[#allocation2 + $0x5c8] sm:$0xff]
    %v258 = vld [vmem:[#allocation2 + $0x5d0] sm:$0xff]
    %v259 = vld [vmem:[#allocation2 + $0x5d8] sm:$0xff]
    %v260 = vld [vmem:[#allocation2 + $0x5e0] sm:$0xff]
    %v261 = vld [vmem:[#allocation2 + $0x5e8] sm:$0xff]
    %v262 = vld [vmem:[#allocation2 + $0x5f0] sm:$0xff]
    %v263 = vld [vmem:[#allocation2 + $0x5f8] sm:$0xff]
    %v264 = vld [vmem:[#allocation2 + $0x600] sm:$0xff]
    %v265 = vld [vmem:[#allocation2 + $0x608] sm:$0xff]
    %v266 = vld [vmem:[#allocation2 + $0x610] sm:$0xff]
    %v267 = vld [vmem:[#allocation2 + $0x618] sm:$0xff]
    %v268 = vld [vmem:[#allocation2 + $0x620] sm:$0xff]
    %v269 = vld [vmem:[#allocation2 + $0x628] sm:$0xff]
    %v270 = vld [vmem:[#allocation2 + $0x630] sm:$0xff]
    %v271 = vld [vmem:[#allocation2 + $0x638] sm:$0xff]
    %v272 = vld [vmem:[#allocation2 + $0x640] sm:$0xff]
    %v273 = vld [vmem:[#allocation2 + $0x648] sm:$0xff]
    %v274 = vld [vmem:[#allocation2 + $0x650] sm:$0xff]
    %v275 = vld [vmem:[#allocation2 + $0x658] sm:$0xff]
    %v276 = vld [vmem:[#allocation2 + $0x660] sm:$0xff]
    %v277 = vld [vmem:[#allocation2 + $0x668] sm:$0xff]
    %v278 = vld [vmem:[#allocation2 + $0x670] sm:$0xff]
    %v279 = vld [vmem:[#allocation2 + $0x678] sm:$0xff]
    %v280 = vld [vmem:[#allocation2 + $0x680] sm:$0xff]
    %v281 = vld [vmem:[#allocation2 + $0x688] sm:$0xff]
    %v282 = vld [vmem:[#allocation2 + $0x690] sm:$0xff]
    %v283 = vld [vmem:[#allocation2 + $0x698] sm:$0xff]
    %v284 = vld [vmem:[#allocation2 + $0x6a0] sm:$0xff]
    %v285 = vld [vmem:[#allocation2 + $0x6a8] sm:$0xff]
    %v286 = vld [vmem:[#allocation2 + $0x6b0] sm:$0xff]
    %v287 = vld [vmem:[#allocation2 + $0x6b8] sm:$0xff]
    %v288 = vld [vmem:[#allocation2 + $0x6c0] sm:$0xff]
    %v289 = vld [vmem:[#allocation2 + $0x6c8] sm:$0xff]
    %v290 = vld [vmem:[#allocation2 + $0x6d0] sm:$0xff]
    %v291 = vld [vmem:[#allocation2 + $0x6d8] sm:$0xff]
    %v292 = vld [vmem:[#allocation2 + $0x6e0] sm:$0xff]
    %v293 = vld [vmem:[#allocation2 + $0x6e8] sm:$0xff]
    %v294 = vld [vmem:[#allocation2 + $0x6f0] sm:$0xff]
    %v295 = vld [vmem:[#allocation2 + $0x6f8] sm:$0xff]
    %v296 = vld [vmem:[#allocation2 + $0x700] sm:$0xff]
    %v297 = vld [vmem:[#allocation2 + $0x708] sm:$0xff]
    %v298 = vld [vmem:[#allocation2 + $0x710] sm:$0xff]
    %v299 = vld [vmem:[#allocation2 + $0x718] sm:$0xff]
    %v300 = vld [vmem:[#allocation2 + $0x720] sm:$0xff]
    %v301 = vld [vmem:[#allocation2 + $0x728] sm:$0xff]
    %v302 = vld [vmem:[#allocation2 + $0x730] sm:$0xff]
    %v303 = vld [vmem:[#allocation2 + $0x738] sm:$0xff]
    %v304 = vld [vmem:[#allocation2 + $0x740] sm:$0xff]
    %v305 = vld [vmem:[#allocation2 + $0x748] sm:$0xff]
    %v306 = vld [vmem:[#allocation2 + $0x750] sm:$0xff]
    %v307 = vld [vmem:[#allocation2 + $0x758] sm:$0xff]
    %v308 = vld [vmem:[#allocation2 + $0x760] sm:$0xff]
    %v309 = vld [vmem:[#allocation2 + $0x768] sm:$0xff]
    %v310 = vld [vmem:[#allocation2 + $0x770] sm:$0xff]
    %v311 = vld [vmem:[#allocation2 + $0x778] sm:$0xff]
    %v312 = vld [vmem:[#allocation2 + $0x780] sm:$0xff]
    %v313 = vld [vmem:[#allocation2 + $0x788] sm:$0xff]
    %v314 = vld [vmem:[#allocation2 + $0x790] sm:$0xff]
    %v315 = vld [vmem:[#allocation2 + $0x798] sm:$0xff]
    %v316 = vld [vmem:[#allocation2 + $0x7a0] sm:$0xff]
    %v317 = vld [vmem:[#allocation2 + $0x7a8] sm:$0xff]
    %v318 = vld [vmem:[#allocation2 + $0x7b0] sm:$0xff]
    %v319 = vld [vmem:[#allocation2 + $0x7b8] sm:$0xff]
    %v320 = vld [vmem:[#allocation2 + $0x7c0] sm:$0xff]
    %v321 = vld [vmem:[#allocation2 + $0x7c8] sm:$0xff]
    %v322 = vld [vmem:[#allocation2 + $0x7d0] sm:$0xff]
    %v323 = vld [vmem:[#allocation2 + $0x7d8] sm:$0xff]
    %v324 = vld [vmem:[#allocation2 + $0x7e0] sm:$0xff]
    %v325 = vld [vmem:[#allocation2 + $0x7e8] sm:$0xff]
    %v326 = vld [vmem:[#allocation2 + $0x7f0] sm:$0xff]
    %v327 = vld [vmem:[#allocation2 + $0x7f8] sm:$0xff]
    %v328 = vld [vmem:[%s2] sm:$0xf]
    %v330 = vlaneseq
    %v331 = vshrl.u32 %v330, 7
    %v332 = vsub.s32 0, %v331
    %v333 = vrot.slane %v328, %v332
    %v334 = vlaneseq
    %v335 = vshrl.u32 %v334, 7
    %v336 = vsub.s32 1, %v335
    %v337 = vrot.slane %v328, %v336
    %v338 = vlaneseq
    %v339 = vshrl.u32 %v338, 7
    %v340 = vsub.s32 2, %v339
    %v341 = vrot.slane %v328, %v340
    %v342 = vlaneseq
    %v343 = vshrl.u32 %v342, 7
    %v344 = vsub.s32 3, %v343
    %v345 = vrot.slane %v328, %v344
    %v351 = vcombine.high %v71, %v71
    %v353 = vunpack.c.l.s4 1966171168
    %v354 = vunpack.c.0.s8 %v353
    %v355 = vlaneseq
    %v356 = vshrl.u32 %v355, 7
    %v357 = vsub.s32 %v354, %v356
    %v358 = vrot.slane %v71, %v357
    %v360 = vunpack.c.l.s4 1966171168
    %v361 = vunpack.c.0.s8 %v360
    %v362 = vlaneseq
    %v363 = vshrl.u32 %v362, 7
    %v364 = vsub.s32 %v361, %v363
    %v365 = vrot.slane %v351, %v364
    %v366 = vcombine.high %v358, %v358
    %v367 = vcombine.high %v365, %v365
    %v369 = vunpack.c.l.s4 1966171168
    %v370 = vunpack.c.0.s8 %v369
    %v371 = vlaneseq
    %v372 = vshrl.u32 %v371, 7
    %v373 = vsub.s32 %v370, %v372
    %v374 = vrot.slane %v358, %v373
    %v376 = vunpack.c.l.s4 1966171168
    %v377 = vunpack.c.0.s8 %v376
    %v378 = vlaneseq
    %v379 = vshrl.u32 %v378, 7
    %v380 = vsub.s32 %v377, %v379
    %v381 = vrot.slane %v365, %v380
    %v383 = vunpack.c.l.s4 1966171168
    %v384 = vunpack.c.0.s8 %v383
    %v385 = vlaneseq
    %v386 = vshrl.u32 %v385, 7
    %v387 = vsub.s32 %v384, %v386
    %v388 = vrot.slane %v366, %v387
    %v390 = vunpack.c.l.s4 1966171168
    %v391 = vunpack.c.0.s8 %v390
    %v392 = vlaneseq
    %v393 = vshrl.u32 %v392, 7
    %v394 = vsub.s32 %v391, %v393
    %v395 = vrot.slane %v367, %v394
    %v396 = vcombine.high %v374, %v374
    %v397 = vcombine.high %v381, %v381
    %v398 = vcombine.high %v388, %v388
    %v399 = vcombine.high %v395, %v395
    %v664 = vunpack.c.l.b16 %v72
    %v665 = vunpack.c.h.b16 %v72
    %v666 = vunpack.c.l.b16 %v73
    %v667 = vunpack.c.h.b16 %v73
    %v668 = vunpack.c.l.b16 %v74
    %v669 = vunpack.c.h.b16 %v74
    %v670 = vunpack.c.l.b16 %v75
    %v671 = vunpack.c.h.b16 %v75
    %v672 = vunpack.c.l.b16 %v76
    %v673 = vunpack.c.h.b16 %v76
    %v674 = vunpack.c.l.b16 %v77
    %v675 = vunpack.c.h.b16 %v77
    %v676 = vunpack.c.l.b16 %v78
    %v677 = vunpack.c.h.b16 %v78
    %v678 = vunpack.c.l.b16 %v79
    %v679 = vunpack.c.h.b16 %v79
    %v680 = vunpack.c.l.b16 %v80
    %v681 = vunpack.c.h.b16 %v80
    %v682 = vunpack.c.l.b16 %v81
    %v683 = vunpack.c.h.b16 %v81
    %v684 = vunpack.c.l.b16 %v82
    %v685 = vunpack.c.h.b16 %v82
    %v686 = vunpack.c.l.b16 %v83
    %v687 = vunpack.c.h.b16 %v83
    %v688 = vunpack.c.l.b16 %v84
    %v689 = vunpack.c.h.b16 %v84
    %v690 = vunpack.c.l.b16 %v85
    %v691 = vunpack.c.h.b16 %v85
    %v692 = vunpack.c.l.b16 %v86
    %v693 = vunpack.c.h.b16 %v86
    %v694 = vunpack.c.l.b16 %v87
    %v695 = vunpack.c.h.b16 %v87
    %v696 = vunpack.c.l.b16 %v88
    %v697 = vunpack.c.h.b16 %v88
    %v698 = vunpack.c.l.b16 %v89
    %v699 = vunpack.c.h.b16 %v89
    %v700 = vunpack.c.l.b16 %v90
    %v701 = vunpack.c.h.b16 %v90
    %v702 = vunpack.c.l.b16 %v91
    %v703 = vunpack.c.h.b16 %v91
    %v704 = vunpack.c.l.b16 %v92
    %v705 = vunpack.c.h.b16 %v92
    %v706 = vunpack.c.l.b16 %v93
    %v707 = vunpack.c.h.b16 %v93
    %v708 = vunpack.c.l.b16 %v94
    %v709 = vunpack.c.h.b16 %v94
    %v710 = vunpack.c.l.b16 %v95
    %v711 = vunpack.c.h.b16 %v95
    %v712 = vunpack.c.l.b16 %v96
    %v713 = vunpack.c.h.b16 %v96
    %v714 = vunpack.c.l.b16 %v97
    %v715 = vunpack.c.h.b16 %v97
    %v716 = vunpack.c.l.b16 %v98
    %v717 = vunpack.c.h.b16 %v98
    %v718 = vunpack.c.l.b16 %v99
    %v719 = vunpack.c.h.b16 %v99
    %v720 = vunpack.c.l.b16 %v100
    %v721 = vunpack.c.h.b16 %v100
    %v722 = vunpack.c.l.b16 %v101
    %v723 = vunpack.c.h.b16 %v101
    %v724 = vunpack.c.l.b16 %v102
    %v725 = vunpack.c.h.b16 %v102
    %v726 = vunpack.c.l.b16 %v103
    %v727 = vunpack.c.h.b16 %v103
    %v728 = vunpack.c.l.b16 %v104
    %v729 = vunpack.c.h.b16 %v104
    %v730 = vunpack.c.l.b16 %v105
    %v731 = vunpack.c.h.b16 %v105
    %v732 = vunpack.c.l.b16 %v106
    %v733 = vunpack.c.h.b16 %v106
    %v734 = vunpack.c.l.b16 %v107
    %v735 = vunpack.c.h.b16 %v107
    %v736 = vunpack.c.l.b16 %v108
    %v737 = vunpack.c.h.b16 %v108
    %v738 = vunpack.c.l.b16 %v109
    %v739 = vunpack.c.h.b16 %v109
    %v740 = vunpack.c.l.b16 %v110
    %v741 = vunpack.c.h.b16 %v110
    %v742 = vunpack.c.l.b16 %v111
    %v743 = vunpack.c.h.b16 %v111
    %v744 = vunpack.c.l.b16 %v112
    %v745 = vunpack.c.h.b16 %v112
    %v746 = vunpack.c.l.b16 %v113
    %v747 = vunpack.c.h.b16 %v113
    %v748 = vunpack.c.l.b16 %v114
    %v749 = vunpack.c.h.b16 %v114
    %v750 = vunpack.c.l.b16 %v115
    %v751 = vunpack.c.h.b16 %v115
    %v752 = vunpack.c.l.b16 %v116
    %v753 = vunpack.c.h.b16 %v116
    %v754 = vunpack.c.l.b16 %v117
    %v755 = vunpack.c.h.b16 %v117
    %v756 = vunpack.c.l.b16 %v118
    %v757 = vunpack.c.h.b16 %v118
    %v758 = vunpack.c.l.b16 %v119
    %v759 = vunpack.c.h.b16 %v119
    %v760 = vunpack.c.l.b16 %v120
    %v761 = vunpack.c.h.b16 %v120
    %v762 = vunpack.c.l.b16 %v121
    %v763 = vunpack.c.h.b16 %v121
    %v764 = vunpack.c.l.b16 %v122
    %v765 = vunpack.c.h.b16 %v122
    %v766 = vunpack.c.l.b16 %v123
    %v767 = vunpack.c.h.b16 %v123
    %v768 = vunpack.c.l.b16 %v124
    %v769 = vunpack.c.h.b16 %v124
    %v770 = vunpack.c.l.b16 %v125
    %v771 = vunpack.c.h.b16 %v125
    %v772 = vunpack.c.l.b16 %v126
    %v773 = vunpack.c.h.b16 %v126
    %v774 = vunpack.c.l.b16 %v127
    %v775 = vunpack.c.h.b16 %v127
    %v776 = vunpack.c.l.b16 %v128
    %v777 = vunpack.c.h.b16 %v128
    %v778 = vunpack.c.l.b16 %v129
    %v779 = vunpack.c.h.b16 %v129
    %v780 = vunpack.c.l.b16 %v130
    %v781 = vunpack.c.h.b16 %v130
    %v782 = vunpack.c.l.b16 %v131
    %v783 = vunpack.c.h.b16 %v131
    %v784 = vunpack.c.l.b16 %v132
    %v785 = vunpack.c.h.b16 %v132
    %v786 = vunpack.c.l.b16 %v133
    %v787 = vunpack.c.h.b16 %v133
    %v788 = vunpack.c.l.b16 %v134
    %v789 = vunpack.c.h.b16 %v134
    %v790 = vunpack.c.l.b16 %v135
    %v791 = vunpack.c.h.b16 %v135
    %v792 = vunpack.c.l.b16 %v136
    %v793 = vunpack.c.h.b16 %v136
    %v794 = vunpack.c.l.b16 %v137
    %v795 = vunpack.c.h.b16 %v137
    %v796 = vunpack.c.l.b16 %v138
    %v797 = vunpack.c.h.b16 %v138
    %v798 = vunpack.c.l.b16 %v139
    %v799 = vunpack.c.h.b16 %v139
    %v800 = vunpack.c.l.b16 %v140
    %v801 = vunpack.c.h.b16 %v140
    %v802 = vunpack.c.l.b16 %v141
    %v803 = vunpack.c.h.b16 %v141
    %v804 = vunpack.c.l.b16 %v142
    %v805 = vunpack.c.h.b16 %v142
    %v806 = vunpack.c.l.b16 %v143
    %v807 = vunpack.c.h.b16 %v143
    %v808 = vunpack.c.l.b16 %v144
    %v809 = vunpack.c.h.b16 %v144
    %v810 = vunpack.c.l.b16 %v145
    %v811 = vunpack.c.h.b16 %v145
    %v812 = vunpack.c.l.b16 %v146
    %v813 = vunpack.c.h.b16 %v146
    %v814 = vunpack.c.l.b16 %v147
    %v815 = vunpack.c.h.b16 %v147
    %v816 = vunpack.c.l.b16 %v148
    %v817 = vunpack.c.h.b16 %v148
    %v818 = vunpack.c.l.b16 %v149
    %v819 = vunpack.c.h.b16 %v149
    %v820 = vunpack.c.l.b16 %v150
    %v821 = vunpack.c.h.b16 %v150
    %v822 = vunpack.c.l.b16 %v151
    %v823 = vunpack.c.h.b16 %v151
    %v824 = vunpack.c.l.b16 %v152
    %v825 = vunpack.c.h.b16 %v152
    %v826 = vunpack.c.l.b16 %v153
    %v827 = vunpack.c.h.b16 %v153
    %v828 = vunpack.c.l.b16 %v154
    %v829 = vunpack.c.h.b16 %v154
    %v830 = vunpack.c.l.b16 %v155
    %v831 = vunpack.c.h.b16 %v155
    %v832 = vunpack.c.l.b16 %v156
    %v833 = vunpack.c.h.b16 %v156
    %v834 = vunpack.c.l.b16 %v157
    %v835 = vunpack.c.h.b16 %v157
    %v836 = vunpack.c.l.b16 %v158
    %v837 = vunpack.c.h.b16 %v158
    %v838 = vunpack.c.l.b16 %v159
    %v839 = vunpack.c.h.b16 %v159
    %v840 = vunpack.c.l.b16 %v160
    %v841 = vunpack.c.h.b16 %v160
    %v842 = vunpack.c.l.b16 %v161
    %v843 = vunpack.c.h.b16 %v161
    %v844 = vunpack.c.l.b16 %v162
    %v845 = vunpack.c.h.b16 %v162
    %v846 = vunpack.c.l.b16 %v163
    %v847 = vunpack.c.h.b16 %v163
    %v848 = vunpack.c.l.b16 %v164
    %v849 = vunpack.c.h.b16 %v164
    %v850 = vunpack.c.l.b16 %v165
    %v851 = vunpack.c.h.b16 %v165
    %v852 = vunpack.c.l.b16 %v166
    %v853 = vunpack.c.h.b16 %v166
    %v854 = vunpack.c.l.b16 %v167
    %v855 = vunpack.c.h.b16 %v167
    %v856 = vunpack.c.l.b16 %v168
    %v857 = vunpack.c.h.b16 %v168
    %v858 = vunpack.c.l.b16 %v169
    %v859 = vunpack.c.h.b16 %v169
    %v860 = vunpack.c.l.b16 %v170
    %v861 = vunpack.c.h.b16 %v170
    %v862 = vunpack.c.l.b16 %v171
    %v863 = vunpack.c.h.b16 %v171
    %v864 = vunpack.c.l.b16 %v172
    %v865 = vunpack.c.h.b16 %v172
    %v866 = vunpack.c.l.b16 %v173
    %v867 = vunpack.c.h.b16 %v173
    %v868 = vunpack.c.l.b16 %v174
    %v869 = vunpack.c.h.b16 %v174
    %v870 = vunpack.c.l.b16 %v175
    %v871 = vunpack.c.h.b16 %v175
    %v872 = vunpack.c.l.b16 %v176
    %v873 = vunpack.c.h.b16 %v176
    %v874 = vunpack.c.l.b16 %v177
    %v875 = vunpack.c.h.b16 %v177
    %v876 = vunpack.c.l.b16 %v178
    %v877 = vunpack.c.h.b16 %v178
    %v878 = vunpack.c.l.b16 %v179
    %v879 = vunpack.c.h.b16 %v179
    %v880 = vunpack.c.l.b16 %v180
    %v881 = vunpack.c.h.b16 %v180
    %v882 = vunpack.c.l.b16 %v181
    %v883 = vunpack.c.h.b16 %v181
    %v884 = vunpack.c.l.b16 %v182
    %v885 = vunpack.c.h.b16 %v182
    %v886 = vunpack.c.l.b16 %v183
    %v887 = vunpack.c.h.b16 %v183
    %v888 = vunpack.c.l.b16 %v184
    %v889 = vunpack.c.h.b16 %v184
    %v890 = vunpack.c.l.b16 %v185
    %v891 = vunpack.c.h.b16 %v185
    %v892 = vunpack.c.l.b16 %v186
    %v893 = vunpack.c.h.b16 %v186
    %v894 = vunpack.c.l.b16 %v187
    %v895 = vunpack.c.h.b16 %v187
    %v896 = vunpack.c.l.b16 %v188
    %v897 = vunpack.c.h.b16 %v188
    %v898 = vunpack.c.l.b16 %v189
    %v899 = vunpack.c.h.b16 %v189
    %v900 = vunpack.c.l.b16 %v190
    %v901 = vunpack.c.h.b16 %v190
    %v902 = vunpack.c.l.b16 %v191
    %v903 = vunpack.c.h.b16 %v191
    %v904 = vunpack.c.l.b16 %v192
    %v905 = vunpack.c.h.b16 %v192
    %v906 = vunpack.c.l.b16 %v193
    %v907 = vunpack.c.h.b16 %v193
    %v908 = vunpack.c.l.b16 %v194
    %v909 = vunpack.c.h.b16 %v194
    %v910 = vunpack.c.l.b16 %v195
    %v911 = vunpack.c.h.b16 %v195
    %v912 = vunpack.c.l.b16 %v196
    %v913 = vunpack.c.h.b16 %v196
    %v914 = vunpack.c.l.b16 %v197
    %v915 = vunpack.c.h.b16 %v197
    %v916 = vunpack.c.l.b16 %v198
    %v917 = vunpack.c.h.b16 %v198
    %v918 = vunpack.c.l.b16 %v199
    %v919 = vunpack.c.h.b16 %v199
    %v920 = vunpack.c.l.b16 %v200
    %v921 = vunpack.c.h.b16 %v200
    %v922 = vunpack.c.l.b16 %v201
    %v923 = vunpack.c.h.b16 %v201
    %v924 = vunpack.c.l.b16 %v202
    %v925 = vunpack.c.h.b16 %v202
    %v926 = vunpack.c.l.b16 %v203
    %v927 = vunpack.c.h.b16 %v203
    %v928 = vunpack.c.l.b16 %v204
    %v929 = vunpack.c.h.b16 %v204
    %v930 = vunpack.c.l.b16 %v205
    %v931 = vunpack.c.h.b16 %v205
    %v932 = vunpack.c.l.b16 %v206
    %v933 = vunpack.c.h.b16 %v206
    %v934 = vunpack.c.l.b16 %v207
    %v935 = vunpack.c.h.b16 %v207
    %v936 = vunpack.c.l.b16 %v208
    %v937 = vunpack.c.h.b16 %v208
    %v938 = vunpack.c.l.b16 %v209
    %v939 = vunpack.c.h.b16 %v209
    %v940 = vunpack.c.l.b16 %v210
    %v941 = vunpack.c.h.b16 %v210
    %v942 = vunpack.c.l.b16 %v211
    %v943 = vunpack.c.h.b16 %v211
    %v944 = vunpack.c.l.b16 %v212
    %v945 = vunpack.c.h.b16 %v212
    %v946 = vunpack.c.l.b16 %v213
    %v947 = vunpack.c.h.b16 %v213
    %v948 = vunpack.c.l.b16 %v214
    %v949 = vunpack.c.h.b16 %v214
    %v950 = vunpack.c.l.b16 %v215
    %v951 = vunpack.c.h.b16 %v215
    %v952 = vunpack.c.l.b16 %v216
    %v953 = vunpack.c.h.b16 %v216
    %v954 = vunpack.c.l.b16 %v217
    %v955 = vunpack.c.h.b16 %v217
    %v956 = vunpack.c.l.b16 %v218
    %v957 = vunpack.c.h.b16 %v218
    %v958 = vunpack.c.l.b16 %v219
    %v959 = vunpack.c.h.b16 %v219
    %v960 = vunpack.c.l.b16 %v220
    %v961 = vunpack.c.h.b16 %v220
    %v962 = vunpack.c.l.b16 %v221
    %v963 = vunpack.c.h.b16 %v221
    %v964 = vunpack.c.l.b16 %v222
    %v965 = vunpack.c.h.b16 %v222
    %v966 = vunpack.c.l.b16 %v223
    %v967 = vunpack.c.h.b16 %v223
    %v968 = vunpack.c.l.b16 %v224
    %v969 = vunpack.c.h.b16 %v224
    %v970 = vunpack.c.l.b16 %v225
    %v971 = vunpack.c.h.b16 %v225
    %v972 = vunpack.c.l.b16 %v226
    %v973 = vunpack.c.h.b16 %v226
    %v974 = vunpack.c.l.b16 %v227
    %v975 = vunpack.c.h.b16 %v227
    %v976 = vunpack.c.l.b16 %v228
    %v977 = vunpack.c.h.b16 %v228
    %v978 = vunpack.c.l.b16 %v229
    %v979 = vunpack.c.h.b16 %v229
    %v980 = vunpack.c.l.b16 %v230
    %v981 = vunpack.c.h.b16 %v230
    %v982 = vunpack.c.l.b16 %v231
    %v983 = vunpack.c.h.b16 %v231
    %v984 = vunpack.c.l.b16 %v232
    %v985 = vunpack.c.h.b16 %v232
    %v986 = vunpack.c.l.b16 %v233
    %v987 = vunpack.c.h.b16 %v233
    %v988 = vunpack.c.l.b16 %v234
    %v989 = vunpack.c.h.b16 %v234
    %v990 = vunpack.c.l.b16 %v235
    %v991 = vunpack.c.h.b16 %v235
    %v992 = vunpack.c.l.b16 %v236
    %v993 = vunpack.c.h.b16 %v236
    %v994 = vunpack.c.l.b16 %v237
    %v995 = vunpack.c.h.b16 %v237
    %v996 = vunpack.c.l.b16 %v238
    %v997 = vunpack.c.h.b16 %v238
    %v998 = vunpack.c.l.b16 %v239
    %v999 = vunpack.c.h.b16 %v239
    %v1000 = vunpack.c.l.b16 %v240
    %v1001 = vunpack.c.h.b16 %v240
    %v1002 = vunpack.c.l.b16 %v241
    %v1003 = vunpack.c.h.b16 %v241
    %v1004 = vunpack.c.l.b16 %v242
    %v1005 = vunpack.c.h.b16 %v242
    %v1006 = vunpack.c.l.b16 %v243
    %v1007 = vunpack.c.h.b16 %v243
    %v1008 = vunpack.c.l.b16 %v244
    %v1009 = vunpack.c.h.b16 %v244
    %v1010 = vunpack.c.l.b16 %v245
    %v1011 = vunpack.c.h.b16 %v245
    %v1012 = vunpack.c.l.b16 %v246
    %v1013 = vunpack.c.h.b16 %v246
    %v1014 = vunpack.c.l.b16 %v247
    %v1015 = vunpack.c.h.b16 %v247
    %v1016 = vunpack.c.l.b16 %v248
    %v1017 = vunpack.c.h.b16 %v248
    %v1018 = vunpack.c.l.b16 %v249
    %v1019 = vunpack.c.h.b16 %v249
    %v1020 = vunpack.c.l.b16 %v250
    %v1021 = vunpack.c.h.b16 %v250
    %v1022 = vunpack.c.l.b16 %v251
    %v1023 = vunpack.c.h.b16 %v251
    %v1024 = vunpack.c.l.b16 %v252
    %v1025 = vunpack.c.h.b16 %v252
    %v1026 = vunpack.c.l.b16 %v253
    %v1027 = vunpack.c.h.b16 %v253
    %v1028 = vunpack.c.l.b16 %v254
    %v1029 = vunpack.c.h.b16 %v254
    %v1030 = vunpack.c.l.b16 %v255
    %v1031 = vunpack.c.h.b16 %v255
    %v1032 = vunpack.c.l.b16 %v256
    %v1033 = vunpack.c.h.b16 %v256
    %v1034 = vunpack.c.l.b16 %v257
    %v1035 = vunpack.c.h.b16 %v257
    %v1036 = vunpack.c.l.b16 %v258
    %v1037 = vunpack.c.h.b16 %v258
    %v1038 = vunpack.c.l.b16 %v259
    %v1039 = vunpack.c.h.b16 %v259
    %v1040 = vunpack.c.l.b16 %v260
    %v1041 = vunpack.c.h.b16 %v260
    %v1042 = vunpack.c.l.b16 %v261
    %v1043 = vunpack.c.h.b16 %v261
    %v1044 = vunpack.c.l.b16 %v262
    %v1045 = vunpack.c.h.b16 %v262
    %v1046 = vunpack.c.l.b16 %v263
    %v1047 = vunpack.c.h.b16 %v263
    %v1048 = vunpack.c.l.b16 %v264
    %v1049 = vunpack.c.h.b16 %v264
    %v1050 = vunpack.c.l.b16 %v265
    %v1051 = vunpack.c.h.b16 %v265
    %v1052 = vunpack.c.l.b16 %v266
    %v1053 = vunpack.c.h.b16 %v266
    %v1054 = vunpack.c.l.b16 %v267
    %v1055 = vunpack.c.h.b16 %v267
    %v1056 = vunpack.c.l.b16 %v268
    %v1057 = vunpack.c.h.b16 %v268
    %v1058 = vunpack.c.l.b16 %v269
    %v1059 = vunpack.c.h.b16 %v269
    %v1060 = vunpack.c.l.b16 %v270
    %v1061 = vunpack.c.h.b16 %v270
    %v1062 = vunpack.c.l.b16 %v271
    %v1063 = vunpack.c.h.b16 %v271
    %v1064 = vunpack.c.l.b16 %v272
    %v1065 = vunpack.c.h.b16 %v272
    %v1066 = vunpack.c.l.b16 %v273
    %v1067 = vunpack.c.h.b16 %v273
    %v1068 = vunpack.c.l.b16 %v274
    %v1069 = vunpack.c.h.b16 %v274
    %v1070 = vunpack.c.l.b16 %v275
    %v1071 = vunpack.c.h.b16 %v275
    %v1072 = vunpack.c.l.b16 %v276
    %v1073 = vunpack.c.h.b16 %v276
    %v1074 = vunpack.c.l.b16 %v277
    %v1075 = vunpack.c.h.b16 %v277
    %v1076 = vunpack.c.l.b16 %v278
    %v1077 = vunpack.c.h.b16 %v278
    %v1078 = vunpack.c.l.b16 %v279
    %v1079 = vunpack.c.h.b16 %v279
    %v1080 = vunpack.c.l.b16 %v280
    %v1081 = vunpack.c.h.b16 %v280
    %v1082 = vunpack.c.l.b16 %v281
    %v1083 = vunpack.c.h.b16 %v281
    %v1084 = vunpack.c.l.b16 %v282
    %v1085 = vunpack.c.h.b16 %v282
    %v1086 = vunpack.c.l.b16 %v283
    %v1087 = vunpack.c.h.b16 %v283
    %v1088 = vunpack.c.l.b16 %v284
    %v1089 = vunpack.c.h.b16 %v284
    %v1090 = vunpack.c.l.b16 %v285
    %v1091 = vunpack.c.h.b16 %v285
    %v1092 = vunpack.c.l.b16 %v286
    %v1093 = vunpack.c.h.b16 %v286
    %v1094 = vunpack.c.l.b16 %v287
    %v1095 = vunpack.c.h.b16 %v287
    %v1096 = vunpack.c.l.b16 %v288
    %v1097 = vunpack.c.h.b16 %v288
    %v1098 = vunpack.c.l.b16 %v289
    %v1099 = vunpack.c.h.b16 %v289
    %v1100 = vunpack.c.l.b16 %v290
    %v1101 = vunpack.c.h.b16 %v290
    %v1102 = vunpack.c.l.b16 %v291
    %v1103 = vunpack.c.h.b16 %v291
    %v1104 = vunpack.c.l.b16 %v292
    %v1105 = vunpack.c.h.b16 %v292
    %v1106 = vunpack.c.l.b16 %v293
    %v1107 = vunpack.c.h.b16 %v293
    %v1108 = vunpack.c.l.b16 %v294
    %v1109 = vunpack.c.h.b16 %v294
    %v1110 = vunpack.c.l.b16 %v295
    %v1111 = vunpack.c.h.b16 %v295
    %v1112 = vunpack.c.l.b16 %v296
    %v1113 = vunpack.c.h.b16 %v296
    %v1114 = vunpack.c.l.b16 %v297
    %v1115 = vunpack.c.h.b16 %v297
    %v1116 = vunpack.c.l.b16 %v298
    %v1117 = vunpack.c.h.b16 %v298
    %v1118 = vunpack.c.l.b16 %v299
    %v1119 = vunpack.c.h.b16 %v299
    %v1120 = vunpack.c.l.b16 %v300
    %v1121 = vunpack.c.h.b16 %v300
    %v1122 = vunpack.c.l.b16 %v301
    %v1123 = vunpack.c.h.b16 %v301
    %v1124 = vunpack.c.l.b16 %v302
    %v1125 = vunpack.c.h.b16 %v302
    %v1126 = vunpack.c.l.b16 %v303
    %v1127 = vunpack.c.h.b16 %v303
    %v1128 = vunpack.c.l.b16 %v304
    %v1129 = vunpack.c.h.b16 %v304
    %v1130 = vunpack.c.l.b16 %v305
    %v1131 = vunpack.c.h.b16 %v305
    %v1132 = vunpack.c.l.b16 %v306
    %v1133 = vunpack.c.h.b16 %v306
    %v1134 = vunpack.c.l.b16 %v307
    %v1135 = vunpack.c.h.b16 %v307
    %v1136 = vunpack.c.l.b16 %v308
    %v1137 = vunpack.c.h.b16 %v308
    %v1138 = vunpack.c.l.b16 %v309
    %v1139 = vunpack.c.h.b16 %v309
    %v1140 = vunpack.c.l.b16 %v310
    %v1141 = vunpack.c.h.b16 %v310
    %v1142 = vunpack.c.l.b16 %v311
    %v1143 = vunpack.c.h.b16 %v311
    %v1144 = vunpack.c.l.b16 %v312
    %v1145 = vunpack.c.h.b16 %v312
    %v1146 = vunpack.c.l.b16 %v313
    %v1147 = vunpack.c.h.b16 %v313
    %v1148 = vunpack.c.l.b16 %v314
    %v1149 = vunpack.c.h.b16 %v314
    %v1150 = vunpack.c.l.b16 %v315
    %v1151 = vunpack.c.h.b16 %v315
    %v1152 = vunpack.c.l.b16 %v316
    %v1153 = vunpack.c.h.b16 %v316
    %v1154 = vunpack.c.l.b16 %v317
    %v1155 = vunpack.c.h.b16 %v317
    %v1156 = vunpack.c.l.b16 %v318
    %v1157 = vunpack.c.h.b16 %v318
    %v1158 = vunpack.c.l.b16 %v319
    %v1159 = vunpack.c.h.b16 %v319
    %v1160 = vunpack.c.l.b16 %v320
    %v1161 = vunpack.c.h.b16 %v320
    %v1162 = vunpack.c.l.b16 %v321
    %v1163 = vunpack.c.h.b16 %v321
    %v1164 = vunpack.c.l.b16 %v322
    %v1165 = vunpack.c.h.b16 %v322
    %v1166 = vunpack.c.l.b16 %v323
    %v1167 = vunpack.c.h.b16 %v323
    %v1168 = vunpack.c.l.b16 %v324
    %v1169 = vunpack.c.h.b16 %v324
    %v1170 = vunpack.c.l.b16 %v325
    %v1171 = vunpack.c.h.b16 %v325
    %v1172 = vunpack.c.l.b16 %v326
    %v1173 = vunpack.c.h.b16 %v326
    %v1174 = vunpack.c.l.b16 %v327
    %v1175 = vunpack.c.h.b16 %v327
    %v1176 = vpack.c.b16 %v668, %v664
    %v1177 = vpack.c.b16 %v669, %v665
    %v1178 = vpack.c.b16 %v670, %v666
    %v1179 = vpack.c.b16 %v671, %v667
    %v1180 = vpack.c.b16 %v676, %v672
    %v1181 = vpack.c.b16 %v677, %v673
    %v1182 = vpack.c.b16 %v678, %v674
    %v1183 = vpack.c.b16 %v679, %v675
    %v1184 = vpack.c.b16 %v684, %v680
    %v1185 = vpack.c.b16 %v685, %v681
    %v1186 = vpack.c.b16 %v686, %v682
    %v1187 = vpack.c.b16 %v687, %v683
    %v1188 = vpack.c.b16 %v692, %v688
    %v1189 = vpack.c.b16 %v693, %v689
    %v1190 = vpack.c.b16 %v694, %v690
    %v1191 = vpack.c.b16 %v695, %v691
    %v1192 = vpack.c.b16 %v700, %v696
    %v1193 = vpack.c.b16 %v701, %v697
    %v1194 = vpack.c.b16 %v702, %v698
    %v1195 = vpack.c.b16 %v703, %v699
    %v1196 = vpack.c.b16 %v708, %v704
    %v1197 = vpack.c.b16 %v709, %v705
    %v1198 = vpack.c.b16 %v710, %v706
    %v1199 = vpack.c.b16 %v711, %v707
    %v1200 = vpack.c.b16 %v716, %v712
    %v1201 = vpack.c.b16 %v717, %v713
    %v1202 = vpack.c.b16 %v718, %v714
    %v1203 = vpack.c.b16 %v719, %v715
    %v1204 = vpack.c.b16 %v724, %v720
    %v1205 = vpack.c.b16 %v725, %v721
    %v1206 = vpack.c.b16 %v726, %v722
    %v1207 = vpack.c.b16 %v727, %v723
    %v1208 = vpack.c.b16 %v732, %v728
    %v1209 = vpack.c.b16 %v733, %v729
    %v1210 = vpack.c.b16 %v734, %v730
    %v1211 = vpack.c.b16 %v735, %v731
    %v1212 = vpack.c.b16 %v740, %v736
    %v1213 = vpack.c.b16 %v741, %v737
    %v1214 = vpack.c.b16 %v742, %v738
    %v1215 = vpack.c.b16 %v743, %v739
    %v1216 = vpack.c.b16 %v748, %v744
    %v1217 = vpack.c.b16 %v749, %v745
    %v1218 = vpack.c.b16 %v750, %v746
    %v1219 = vpack.c.b16 %v751, %v747
    %v1220 = vpack.c.b16 %v756, %v752
    %v1221 = vpack.c.b16 %v757, %v753
    %v1222 = vpack.c.b16 %v758, %v754
    %v1223 = vpack.c.b16 %v759, %v755
    %v1224 = vpack.c.b16 %v764, %v760
    %v1225 = vpack.c.b16 %v765, %v761
    %v1226 = vpack.c.b16 %v766, %v762
    %v1227 = vpack.c.b16 %v767, %v763
    %v1228 = vpack.c.b16 %v772, %v768
    %v1229 = vpack.c.b16 %v773, %v769
    %v1230 = vpack.c.b16 %v774, %v770
    %v1231 = vpack.c.b16 %v775, %v771
    %v1232 = vpack.c.b16 %v780, %v776
    %v1233 = vpack.c.b16 %v781, %v777
    %v1234 = vpack.c.b16 %v782, %v778
    %v1235 = vpack.c.b16 %v783, %v779
    %v1236 = vpack.c.b16 %v788, %v784
    %v1237 = vpack.c.b16 %v789, %v785
    %v1238 = vpack.c.b16 %v790, %v786
    %v1239 = vpack.c.b16 %v791, %v787
    %v1240 = vpack.c.b16 %v796, %v792
    %v1241 = vpack.c.b16 %v797, %v793
    %v1242 = vpack.c.b16 %v798, %v794
    %v1243 = vpack.c.b16 %v799, %v795
    %v1244 = vpack.c.b16 %v804, %v800
    %v1245 = vpack.c.b16 %v805, %v801
    %v1246 = vpack.c.b16 %v806, %v802
    %v1247 = vpack.c.b16 %v807, %v803
    %v1248 = vpack.c.b16 %v812, %v808
    %v1249 = vpack.c.b16 %v813, %v809
    %v1250 = vpack.c.b16 %v814, %v810
    %v1251 = vpack.c.b16 %v815, %v811
    %v1252 = vpack.c.b16 %v820, %v816
    %v1253 = vpack.c.b16 %v821, %v817
    %v1254 = vpack.c.b16 %v822, %v818
    %v1255 = vpack.c.b16 %v823, %v819
    %v1256 = vpack.c.b16 %v828, %v824
    %v1257 = vpack.c.b16 %v829, %v825
    %v1258 = vpack.c.b16 %v830, %v826
    %v1259 = vpack.c.b16 %v831, %v827
    %v1260 = vpack.c.b16 %v836, %v832
    %v1261 = vpack.c.b16 %v837, %v833
    %v1262 = vpack.c.b16 %v838, %v834
    %v1263 = vpack.c.b16 %v839, %v835
    %v1264 = vpack.c.b16 %v844, %v840
    %v1265 = vpack.c.b16 %v845, %v841
    %v1266 = vpack.c.b16 %v846, %v842
    %v1267 = vpack.c.b16 %v847, %v843
    %v1268 = vpack.c.b16 %v852, %v848
    %v1269 = vpack.c.b16 %v853, %v849
    %v1270 = vpack.c.b16 %v854, %v850
    %v1271 = vpack.c.b16 %v855, %v851
    %v1272 = vpack.c.b16 %v860, %v856
    %v1273 = vpack.c.b16 %v861, %v857
    %v1274 = vpack.c.b16 %v862, %v858
    %v1275 = vpack.c.b16 %v863, %v859
    %v1276 = vpack.c.b16 %v868, %v864
    %v1277 = vpack.c.b16 %v869, %v865
    %v1278 = vpack.c.b16 %v870, %v866
    %v1279 = vpack.c.b16 %v871, %v867
    %v1280 = vpack.c.b16 %v876, %v872
    %v1281 = vpack.c.b16 %v877, %v873
    %v1282 = vpack.c.b16 %v878, %v874
    %v1283 = vpack.c.b16 %v879, %v875
    %v1284 = vpack.c.b16 %v884, %v880
    %v1285 = vpack.c.b16 %v885, %v881
    %v1286 = vpack.c.b16 %v886, %v882
    %v1287 = vpack.c.b16 %v887, %v883
    %v1288 = vpack.c.b16 %v892, %v888
    %v1289 = vpack.c.b16 %v893, %v889
    %v1290 = vpack.c.b16 %v894, %v890
    %v1291 = vpack.c.b16 %v895, %v891
    %v1292 = vpack.c.b16 %v900, %v896
    %v1293 = vpack.c.b16 %v901, %v897
    %v1294 = vpack.c.b16 %v902, %v898
    %v1295 = vpack.c.b16 %v903, %v899
    %v1296 = vpack.c.b16 %v908, %v904
    %v1297 = vpack.c.b16 %v909, %v905
    %v1298 = vpack.c.b16 %v910, %v906
    %v1299 = vpack.c.b16 %v911, %v907
    %v1300 = vpack.c.b16 %v916, %v912
    %v1301 = vpack.c.b16 %v917, %v913
    %v1302 = vpack.c.b16 %v918, %v914
    %v1303 = vpack.c.b16 %v919, %v915
    %v1304 = vpack.c.b16 %v924, %v920
    %v1305 = vpack.c.b16 %v925, %v921
    %v1306 = vpack.c.b16 %v926, %v922
    %v1307 = vpack.c.b16 %v927, %v923
    %v1308 = vpack.c.b16 %v932, %v928
    %v1309 = vpack.c.b16 %v933, %v929
    %v1310 = vpack.c.b16 %v934, %v930
    %v1311 = vpack.c.b16 %v935, %v931
    %v1312 = vpack.c.b16 %v940, %v936
    %v1313 = vpack.c.b16 %v941, %v937
    %v1314 = vpack.c.b16 %v942, %v938
    %v1315 = vpack.c.b16 %v943, %v939
    %v1316 = vpack.c.b16 %v948, %v944
    %v1317 = vpack.c.b16 %v949, %v945
    %v1318 = vpack.c.b16 %v950, %v946
    %v1319 = vpack.c.b16 %v951, %v947
    %v1320 = vpack.c.b16 %v956, %v952
    %v1321 = vpack.c.b16 %v957, %v953
    %v1322 = vpack.c.b16 %v958, %v954
    %v1323 = vpack.c.b16 %v959, %v955
    %v1324 = vpack.c.b16 %v964, %v960
    %v1325 = vpack.c.b16 %v965, %v961
    %v1326 = vpack.c.b16 %v966, %v962
    %v1327 = vpack.c.b16 %v967, %v963
    %v1328 = vpack.c.b16 %v972, %v968
    %v1329 = vpack.c.b16 %v973, %v969
    %v1330 = vpack.c.b16 %v974, %v970
    %v1331 = vpack.c.b16 %v975, %v971
    %v1332 = vpack.c.b16 %v980, %v976
    %v1333 = vpack.c.b16 %v981, %v977
    %v1334 = vpack.c.b16 %v982, %v978
    %v1335 = vpack.c.b16 %v983, %v979
    %v1336 = vpack.c.b16 %v988, %v984
    %v1337 = vpack.c.b16 %v989, %v985
    %v1338 = vpack.c.b16 %v990, %v986
    %v1339 = vpack.c.b16 %v991, %v987
    %v1340 = vpack.c.b16 %v996, %v992
    %v1341 = vpack.c.b16 %v997, %v993
    %v1342 = vpack.c.b16 %v998, %v994
    %v1343 = vpack.c.b16 %v999, %v995
    %v1344 = vpack.c.b16 %v1004, %v1000
    %v1345 = vpack.c.b16 %v1005, %v1001
    %v1346 = vpack.c.b16 %v1006, %v1002
    %v1347 = vpack.c.b16 %v1007, %v1003
    %v1348 = vpack.c.b16 %v1012, %v1008
    %v1349 = vpack.c.b16 %v1013, %v1009
    %v1350 = vpack.c.b16 %v1014, %v1010
    %v1351 = vpack.c.b16 %v1015, %v1011
    %v1352 = vpack.c.b16 %v1020, %v1016
    %v1353 = vpack.c.b16 %v1021, %v1017
    %v1354 = vpack.c.b16 %v1022, %v1018
    %v1355 = vpack.c.b16 %v1023, %v1019
    %v1356 = vpack.c.b16 %v1028, %v1024
    %v1357 = vpack.c.b16 %v1029, %v1025
    %v1358 = vpack.c.b16 %v1030, %v1026
    %v1359 = vpack.c.b16 %v1031, %v1027
    %v1360 = vpack.c.b16 %v1036, %v1032
    %v1361 = vpack.c.b16 %v1037, %v1033
    %v1362 = vpack.c.b16 %v1038, %v1034
    %v1363 = vpack.c.b16 %v1039, %v1035
    %v1364 = vpack.c.b16 %v1044, %v1040
    %v1365 = vpack.c.b16 %v1045, %v1041
    %v1366 = vpack.c.b16 %v1046, %v1042
    %v1367 = vpack.c.b16 %v1047, %v1043
    %v1368 = vpack.c.b16 %v1052, %v1048
    %v1369 = vpack.c.b16 %v1053, %v1049
    %v1370 = vpack.c.b16 %v1054, %v1050
    %v1371 = vpack.c.b16 %v1055, %v1051
    %v1372 = vpack.c.b16 %v1060, %v1056
    %v1373 = vpack.c.b16 %v1061, %v1057
    %v1374 = vpack.c.b16 %v1062, %v1058
    %v1375 = vpack.c.b16 %v1063, %v1059
    %v1376 = vpack.c.b16 %v1068, %v1064
    %v1377 = vpack.c.b16 %v1069, %v1065
    %v1378 = vpack.c.b16 %v1070, %v1066
    %v1379 = vpack.c.b16 %v1071, %v1067
    %v1380 = vpack.c.b16 %v1076, %v1072
    %v1381 = vpack.c.b16 %v1077, %v1073
    %v1382 = vpack.c.b16 %v1078, %v1074
    %v1383 = vpack.c.b16 %v1079, %v1075
    %v1384 = vpack.c.b16 %v1084, %v1080
    %v1385 = vpack.c.b16 %v1085, %v1081
    %v1386 = vpack.c.b16 %v1086, %v1082
    %v1387 = vpack.c.b16 %v1087, %v1083
    %v1388 = vpack.c.b16 %v1092, %v1088
    %v1389 = vpack.c.b16 %v1093, %v1089
    %v1390 = vpack.c.b16 %v1094, %v1090
    %v1391 = vpack.c.b16 %v1095, %v1091
    %v1392 = vpack.c.b16 %v1100, %v1096
    %v1393 = vpack.c.b16 %v1101, %v1097
    %v1394 = vpack.c.b16 %v1102, %v1098
    %v1395 = vpack.c.b16 %v1103, %v1099
    %v1396 = vpack.c.b16 %v1108, %v1104
    %v1397 = vpack.c.b16 %v1109, %v1105
    %v1398 = vpack.c.b16 %v1110, %v1106
    %v1399 = vpack.c.b16 %v1111, %v1107
    %v1400 = vpack.c.b16 %v1116, %v1112
    %v1401 = vpack.c.b16 %v1117, %v1113
    %v1402 = vpack.c.b16 %v1118, %v1114
    %v1403 = vpack.c.b16 %v1119, %v1115
    %v1404 = vpack.c.b16 %v1124, %v1120
    %v1405 = vpack.c.b16 %v1125, %v1121
    %v1406 = vpack.c.b16 %v1126, %v1122
    %v1407 = vpack.c.b16 %v1127, %v1123
    %v1408 = vpack.c.b16 %v1132, %v1128
    %v1409 = vpack.c.b16 %v1133, %v1129
    %v1410 = vpack.c.b16 %v1134, %v1130
    %v1411 = vpack.c.b16 %v1135, %v1131
    %v1412 = vpack.c.b16 %v1140, %v1136
    %v1413 = vpack.c.b16 %v1141, %v1137
    %v1414 = vpack.c.b16 %v1142, %v1138
    %v1415 = vpack.c.b16 %v1143, %v1139
    %v1416 = vpack.c.b16 %v1148, %v1144
    %v1417 = vpack.c.b16 %v1149, %v1145
    %v1418 = vpack.c.b16 %v1150, %v1146
    %v1419 = vpack.c.b16 %v1151, %v1147
    %v1420 = vpack.c.b16 %v1156, %v1152
    %v1421 = vpack.c.b16 %v1157, %v1153
    %v1422 = vpack.c.b16 %v1158, %v1154
    %v1423 = vpack.c.b16 %v1159, %v1155
    %v1424 = vpack.c.b16 %v1164, %v1160
    %v1425 = vpack.c.b16 %v1165, %v1161
    %v1426 = vpack.c.b16 %v1166, %v1162
    %v1427 = vpack.c.b16 %v1167, %v1163
    %v1428 = vpack.c.b16 %v1172, %v1168
    %v1429 = vpack.c.b16 %v1173, %v1169
    %v1430 = vpack.c.b16 %v1174, %v1170
    %v1431 = vpack.c.b16 %v1175, %v1171
    %1688 = vmatprep.subr.bf16.mxu0 %v1177
    %1689 = vmatpush1.bf16.msra.mxu0 %v1176
    %1690 = vmatprep.subr.bf16.mxu0 %v1181
    %1691 = vmatpush1.bf16.msra.mxu0 %v1180
    %1692 = vmatprep.subr.bf16.mxu0 %v1185
    %1693 = vmatpush1.bf16.msra.mxu0 %v1184
    %1694 = vmatprep.subr.bf16.mxu0 %v1189
    %1695 = vmatpush1.bf16.msra.mxu0 %v1188
    %1696 = vmatprep.subr.bf16.mxu0 %v1193
    %1697 = vmatpush1.bf16.msra.mxu0 %v1192
    %1698 = vmatprep.subr.bf16.mxu0 %v1197
    %1699 = vmatpush1.bf16.msra.mxu0 %v1196
    %1700 = vmatprep.subr.bf16.mxu0 %v1201
    %1701 = vmatpush1.bf16.msra.mxu0 %v1200
    %1702 = vmatprep.subr.bf16.mxu0 %v1205
    %1703 = vmatpush1.bf16.msra.mxu0 %v1204
    %1704 = vmatprep.subr.bf16.mxu0 %v1209
    %1705 = vmatpush1.bf16.msra.mxu0 %v1208
    %1706 = vmatprep.subr.bf16.mxu0 %v1213
    %1707 = vmatpush1.bf16.msra.mxu0 %v1212
    %1708 = vmatprep.subr.bf16.mxu0 %v1217
    %1709 = vmatpush1.bf16.msra.mxu0 %v1216
    %1710 = vmatprep.subr.bf16.mxu0 %v1221
    %1711 = vmatpush1.bf16.msra.mxu0 %v1220
    %1712 = vmatprep.subr.bf16.mxu0 %v1225
    %1713 = vmatpush1.bf16.msra.mxu0 %v1224
    %1714 = vmatprep.subr.bf16.mxu0 %v1229
    %1715 = vmatpush1.bf16.msra.mxu0 %v1228
    %1716 = vmatprep.subr.bf16.mxu0 %v1233
    %1717 = vmatpush1.bf16.msra.mxu0 %v1232
    %1718 = vmatprep.subr.bf16.mxu0 %v1237
    %1719 = vmatpush1.bf16.msra.mxu0 %v1236
    %1720 = vmatprep.mubr.bf16.mxu0 %v388
    %1721 = vmatmul.mubr.bf16.gmra.mrb[0].mxu0 %v374
    %v1722 = vpop.f32.mrb[0].mxu0
    %v1723 = vadd.f32 %v333, %v1722
    %v1724 = vpop.f32.mrb[0].mxu0
    %v1725 = vadd.f32 %v337, %v1724
    %v1726 = vpop.f32.mrb[0].mxu0
    %v1727 = vpop.f32.mrb[0].mxu0
    %1728 = vdwg.mxu0
    %1729 = vmatprep.subr.bf16.mxu0 %v1241
    %1730 = vmatpush1.bf16.msra.mxu0 %v1240
    %1731 = vmatprep.subr.bf16.mxu0 %v1245
    %1732 = vmatpush1.bf16.msra.mxu0 %v1244
    %1733 = vmatprep.subr.bf16.mxu0 %v1249
    %1734 = vmatpush1.bf16.msra.mxu0 %v1248
    %1735 = vmatprep.subr.bf16.mxu0 %v1253
    %1736 = vmatpush1.bf16.msra.mxu0 %v1252
    %1737 = vmatprep.subr.bf16.mxu0 %v1257
    %1738 = vmatpush1.bf16.msra.mxu0 %v1256
    %1739 = vmatprep.subr.bf16.mxu0 %v1261
    %1740 = vmatpush1.bf16.msra.mxu0 %v1260
    %1741 = vmatprep.subr.bf16.mxu0 %v1265
    %1742 = vmatpush1.bf16.msra.mxu0 %v1264
    %1743 = vmatprep.subr.bf16.mxu0 %v1269
    %1744 = vmatpush1.bf16.msra.mxu0 %v1268
    %1745 = vmatprep.subr.bf16.mxu0 %v1273
    %1746 = vmatpush1.bf16.msra.mxu0 %v1272
    %1747 = vmatprep.subr.bf16.mxu0 %v1277
    %1748 = vmatpush1.bf16.msra.mxu0 %v1276
    %1749 = vmatprep.subr.bf16.mxu0 %v1281
    %1750 = vmatpush1.bf16.msra.mxu0 %v1280
    %1751 = vmatprep.subr.bf16.mxu0 %v1285
    %1752 = vmatpush1.bf16.msra.mxu0 %v1284
    %1753 = vmatprep.subr.bf16.mxu0 %v1289
    %1754 = vmatpush1.bf16.msra.mxu0 %v1288
    %1755 = vmatprep.subr.bf16.mxu0 %v1293
    %1756 = vmatpush1.bf16.msra.mxu0 %v1292
    %1757 = vmatprep.subr.bf16.mxu0 %v1297
    %1758 = vmatpush1.bf16.msra.mxu0 %v1296
    %1759 = vmatprep.subr.bf16.mxu0 %v1301
    %1760 = vmatpush1.bf16.msra.mxu0 %v1300
    %1761 = vmatprep.mubr.bf16.mxu0 %v398
    %1762 = vmatmul.mubr.bf16.gmra.mrb[0].mxu0 %v396
    %v1763 = vpop.f32.mrb[0].mxu0
    %v1764 = vadd.f32 %v1723, %v1763
    %v1765 = vpop.f32.mrb[0].mxu0
    %v1766 = vadd.f32 %v1725, %v1765
    %v1767 = vpop.f32.mrb[0].mxu0
    %v1768 = vpop.f32.mrb[0].mxu0
    %1769 = vdwg.mxu0
    %1770 = vmatprep.subr.bf16.mxu0 %v1305
    %1771 = vmatpush1.bf16.msra.mxu0 %v1304
    %1772 = vmatprep.subr.bf16.mxu0 %v1309
    %1773 = vmatpush1.bf16.msra.mxu0 %v1308
    %1774 = vmatprep.subr.bf16.mxu0 %v1313
    %1775 = vmatpush1.bf16.msra.mxu0 %v1312
    %1776 = vmatprep.subr.bf16.mxu0 %v1317
    %1777 = vmatpush1.bf16.msra.mxu0 %v1316
    %1778 = vmatprep.subr.bf16.mxu0 %v1321
    %1779 = vmatpush1.bf16.msra.mxu0 %v1320
    %1780 = vmatprep.subr.bf16.mxu0 %v1325
    %1781 = vmatpush1.bf16.msra.mxu0 %v1324
    %1782 = vmatprep.subr.bf16.mxu0 %v1329
    %1783 = vmatpush1.bf16.msra.mxu0 %v1328
    %1784 = vmatprep.subr.bf16.mxu0 %v1333
    %1785 = vmatpush1.bf16.msra.mxu0 %v1332
    %1786 = vmatprep.subr.bf16.mxu0 %v1337
    %1787 = vmatpush1.bf16.msra.mxu0 %v1336
    %1788 = vmatprep.subr.bf16.mxu0 %v1341
    %1789 = vmatpush1.bf16.msra.mxu0 %v1340
    %1790 = vmatprep.subr.bf16.mxu0 %v1345
    %1791 = vmatpush1.bf16.msra.mxu0 %v1344
    %1792 = vmatprep.subr.bf16.mxu0 %v1349
    %1793 = vmatpush1.bf16.msra.mxu0 %v1348
    %1794 = vmatprep.subr.bf16.mxu0 %v1353
    %1795 = vmatpush1.bf16.msra.mxu0 %v1352
    %1796 = vmatprep.subr.bf16.mxu0 %v1357
    %1797 = vmatpush1.bf16.msra.mxu0 %v1356
    %1798 = vmatprep.subr.bf16.mxu0 %v1361
    %1799 = vmatpush1.bf16.msra.mxu0 %v1360
    %1800 = vmatprep.subr.bf16.mxu0 %v1365
    %1801 = vmatpush1.bf16.msra.mxu0 %v1364
    %1802 = vmatprep.mubr.bf16.mxu0 %v395
    %1803 = vmatmul.mubr.bf16.gmra.mrb[0].mxu0 %v381
    %v1804 = vpop.f32.mrb[0].mxu0
    %v1805 = vadd.f32 %v1764, %v1804
    %v1806 = vpop.f32.mrb[0].mxu0
    %v1807 = vadd.f32 %v1766, %v1806
    %v1808 = vpop.f32.mrb[0].mxu0
    %v1809 = vpop.f32.mrb[0].mxu0
    %1810 = vdwg.mxu0
    %1811 = vmatprep.subr.bf16.mxu0 %v1369
    %1812 = vmatpush1.bf16.msra.mxu0 %v1368
    %1813 = vmatprep.subr.bf16.mxu0 %v1373
    %1814 = vmatpush1.bf16.msra.mxu0 %v1372
    %1815 = vmatprep.subr.bf16.mxu0 %v1377
    %1816 = vmatpush1.bf16.msra.mxu0 %v1376
    %1817 = vmatprep.subr.bf16.mxu0 %v1381
    %1818 = vmatpush1.bf16.msra.mxu0 %v1380
    %1819 = vmatprep.subr.bf16.mxu0 %v1385
    %1820 = vmatpush1.bf16.msra.mxu0 %v1384
    %1821 = vmatprep.subr.bf16.mxu0 %v1389
    %1822 = vmatpush1.bf16.msra.mxu0 %v1388
    %1823 = vmatprep.subr.bf16.mxu0 %v1393
    %1824 = vmatpush1.bf16.msra.mxu0 %v1392
    %1825 = vmatprep.subr.bf16.mxu0 %v1397
    %1826 = vmatpush1.bf16.msra.mxu0 %v1396
    %1827 = vmatprep.subr.bf16.mxu0 %v1401
    %1828 = vmatpush1.bf16.msra.mxu0 %v1400
    %1829 = vmatprep.subr.bf16.mxu0 %v1405
    %1830 = vmatpush1.bf16.msra.mxu0 %v1404
    %1831 = vmatprep.subr.bf16.mxu0 %v1409
    %1832 = vmatpush1.bf16.msra.mxu0 %v1408
    %1833 = vmatprep.subr.bf16.mxu0 %v1413
    %1834 = vmatpush1.bf16.msra.mxu0 %v1412
    %1835 = vmatprep.subr.bf16.mxu0 %v1417
    %1836 = vmatpush1.bf16.msra.mxu0 %v1416
    %1837 = vmatprep.subr.bf16.mxu0 %v1421
    %1838 = vmatpush1.bf16.msra.mxu0 %v1420
    %1839 = vmatprep.subr.bf16.mxu0 %v1425
    %1840 = vmatpush1.bf16.msra.mxu0 %v1424
    %1841 = vmatprep.subr.bf16.mxu0 %v1429
    %1842 = vmatpush1.bf16.msra.mxu0 %v1428
    %1843 = vmatprep.mubr.bf16.mxu0 %v399
    %1844 = vmatmul.mubr.bf16.gmra.mrb[0].mxu0 %v397
    %v1845 = vpop.f32.mrb[0].mxu0
    %v1846 = vadd.f32 %v1805, %v1845
    %v1847 = vpop.f32.mrb[0].mxu0
    %v1848 = vadd.f32 %v1807, %v1847
    %v1849 = vpop.f32.mrb[0].mxu0
    %v1850 = vpop.f32.mrb[0].mxu0
    %1851 = vdwg.mxu0
    %1852 = vmatprep.subr.bf16.mxu0 %v1179
    %1853 = vmatpush1.bf16.msra.mxu0 %v1178
    %1854 = vmatprep.subr.bf16.mxu0 %v1183
    %1855 = vmatpush1.bf16.msra.mxu0 %v1182
    %1856 = vmatprep.subr.bf16.mxu0 %v1187
    %1857 = vmatpush1.bf16.msra.mxu0 %v1186
    %1858 = vmatprep.subr.bf16.mxu0 %v1191
    %1859 = vmatpush1.bf16.msra.mxu0 %v1190
    %1860 = vmatprep.subr.bf16.mxu0 %v1195
    %1861 = vmatpush1.bf16.msra.mxu0 %v1194
    %1862 = vmatprep.subr.bf16.mxu0 %v1199
    %1863 = vmatpush1.bf16.msra.mxu0 %v1198
    %1864 = vmatprep.subr.bf16.mxu0 %v1203
    %1865 = vmatpush1.bf16.msra.mxu0 %v1202
    %1866 = vmatprep.subr.bf16.mxu0 %v1207
    %1867 = vmatpush1.bf16.msra.mxu0 %v1206
    %1868 = vmatprep.subr.bf16.mxu0 %v1211
    %1869 = vmatpush1.bf16.msra.mxu0 %v1210
    %1870 = vmatprep.subr.bf16.mxu0 %v1215
    %1871 = vmatpush1.bf16.msra.mxu0 %v1214
    %1872 = vmatprep.subr.bf16.mxu0 %v1219
    %1873 = vmatpush1.bf16.msra.mxu0 %v1218
    %1874 = vmatprep.subr.bf16.mxu0 %v1223
    %1875 = vmatpush1.bf16.msra.mxu0 %v1222
    %1876 = vmatprep.subr.bf16.mxu0 %v1227
    %1877 = vmatpush1.bf16.msra.mxu0 %v1226
    %1878 = vmatprep.subr.bf16.mxu0 %v1231
    %1879 = vmatpush1.bf16.msra.mxu0 %v1230
    %1880 = vmatprep.subr.bf16.mxu0 %v1235
    %1881 = vmatpush1.bf16.msra.mxu0 %v1234
    %1882 = vmatprep.subr.bf16.mxu0 %v1239
    %1883 = vmatpush1.bf16.msra.mxu0 %v1238
    %1884 = vmatprep.mubr.bf16.mxu0 %v388
    %1885 = vmatmul.mubr.bf16.gmra.mrb[0].mxu0 %v374
    %v1886 = vpop.f32.mrb[0].mxu0
    %v1887 = vadd.f32 %v341, %v1886
    %v1888 = vpop.f32.mrb[0].mxu0
    %v1889 = vadd.f32 %v345, %v1888
    %v1890 = vpop.f32.mrb[0].mxu0
    %v1891 = vpop.f32.mrb[0].mxu0
    %1892 = vdwg.mxu0
    %1893 = vmatprep.subr.bf16.mxu0 %v1243
    %1894 = vmatpush1.bf16.msra.mxu0 %v1242
    %1895 = vmatprep.subr.bf16.mxu0 %v1247
    %1896 = vmatpush1.bf16.msra.mxu0 %v1246
    %1897 = vmatprep.subr.bf16.mxu0 %v1251
    %1898 = vmatpush1.bf16.msra.mxu0 %v1250
    %1899 = vmatprep.subr.bf16.mxu0 %v1255
    %1900 = vmatpush1.bf16.msra.mxu0 %v1254
    %1901 = vmatprep.subr.bf16.mxu0 %v1259
    %1902 = vmatpush1.bf16.msra.mxu0 %v1258
    %1903 = vmatprep.subr.bf16.mxu0 %v1263
    %1904 = vmatpush1.bf16.msra.mxu0 %v1262
    %1905 = vmatprep.subr.bf16.mxu0 %v1267
    %1906 = vmatpush1.bf16.msra.mxu0 %v1266
    %1907 = vmatprep.subr.bf16.mxu0 %v1271
    %1908 = vmatpush1.bf16.msra.mxu0 %v1270
    %1909 = vmatprep.subr.bf16.mxu0 %v1275
    %1910 = vmatpush1.bf16.msra.mxu0 %v1274
    %1911 = vmatprep.subr.bf16.mxu0 %v1279
    %1912 = vmatpush1.bf16.msra.mxu0 %v1278
    %1913 = vmatprep.subr.bf16.mxu0 %v1283
    %1914 = vmatpush1.bf16.msra.mxu0 %v1282
    %1915 = vmatprep.subr.bf16.mxu0 %v1287
    %1916 = vmatpush1.bf16.msra.mxu0 %v1286
    %1917 = vmatprep.subr.bf16.mxu0 %v1291
    %1918 = vmatpush1.bf16.msra.mxu0 %v1290
    %1919 = vmatprep.subr.bf16.mxu0 %v1295
    %1920 = vmatpush1.bf16.msra.mxu0 %v1294
    %1921 = vmatprep.subr.bf16.mxu0 %v1299
    %1922 = vmatpush1.bf16.msra.mxu0 %v1298
    %1923 = vmatprep.subr.bf16.mxu0 %v1303
    %1924 = vmatpush1.bf16.msra.mxu0 %v1302
    %1925 = vmatprep.mubr.bf16.mxu0 %v398
    %1926 = vmatmul.mubr.bf16.gmra.mrb[0].mxu0 %v396
    %v1927 = vpop.f32.mrb[0].mxu0
    %v1928 = vadd.f32 %v1887, %v1927
    %v1929 = vpop.f32.mrb[0].mxu0
    %v1930 = vadd.f32 %v1889, %v1929
    %v1931 = vpop.f32.mrb[0].mxu0
    %v1932 = vpop.f32.mrb[0].mxu0
    %1933 = vdwg.mxu0
    %1934 = vmatprep.subr.bf16.mxu0 %v1307
    %1935 = vmatpush1.bf16.msra.mxu0 %v1306
    %1936 = vmatprep.subr.bf16.mxu0 %v1311
    %1937 = vmatpush1.bf16.msra.mxu0 %v1310
    %1938 = vmatprep.subr.bf16.mxu0 %v1315
    %1939 = vmatpush1.bf16.msra.mxu0 %v1314
    %1940 = vmatprep.subr.bf16.mxu0 %v1319
    %1941 = vmatpush1.bf16.msra.mxu0 %v1318
    %1942 = vmatprep.subr.bf16.mxu0 %v1323
    %1943 = vmatpush1.bf16.msra.mxu0 %v1322
    %1944 = vmatprep.subr.bf16.mxu0 %v1327
    %1945 = vmatpush1.bf16.msra.mxu0 %v1326
    %1946 = vmatprep.subr.bf16.mxu0 %v1331
    %1947 = vmatpush1.bf16.msra.mxu0 %v1330
    %1948 = vmatprep.subr.bf16.mxu0 %v1335
    %1949 = vmatpush1.bf16.msra.mxu0 %v1334
    %1950 = vmatprep.subr.bf16.mxu0 %v1339
    %1951 = vmatpush1.bf16.msra.mxu0 %v1338
    %1952 = vmatprep.subr.bf16.mxu0 %v1343
    %1953 = vmatpush1.bf16.msra.mxu0 %v1342
    %1954 = vmatprep.subr.bf16.mxu0 %v1347
    %1955 = vmatpush1.bf16.msra.mxu0 %v1346
    %1956 = vmatprep.subr.bf16.mxu0 %v1351
    %1957 = vmatpush1.bf16.msra.mxu0 %v1350
    %1958 = vmatprep.subr.bf16.mxu0 %v1355
    %1959 = vmatpush1.bf16.msra.mxu0 %v1354
    %1960 = vmatprep.subr.bf16.mxu0 %v1359
    %1961 = vmatpush1.bf16.msra.mxu0 %v1358
    %1962 = vmatprep.subr.bf16.mxu0 %v1363
    %1963 = vmatpush1.bf16.msra.mxu0 %v1362
    %1964 = vmatprep.subr.bf16.mxu0 %v1367
    %1965 = vmatpush1.bf16.msra.mxu0 %v1366
    %1966 = vmatprep.mubr.bf16.mxu0 %v395
    %1967 = vmatmul.mubr.bf16.gmra.mrb[0].mxu0 %v381
    %v1968 = vpop.f32.mrb[0].mxu0
    %v1969 = vadd.f32 %v1928, %v1968
    %v1970 = vpop.f32.mrb[0].mxu0
    %v1971 = vadd.f32 %v1930, %v1970
    %v1972 = vpop.f32.mrb[0].mxu0
    %v1973 = vpop.f32.mrb[0].mxu0
    %1974 = vdwg.mxu0
    %1975 = vmatprep.subr.bf16.mxu0 %v1371
    %1976 = vmatpush1.bf16.msra.mxu0 %v1370
    %1977 = vmatprep.subr.bf16.mxu0 %v1375
    %1978 = vmatpush1.bf16.msra.mxu0 %v1374
    %1979 = vmatprep.subr.bf16.mxu0 %v1379
    %1980 = vmatpush1.bf16.msra.mxu0 %v1378
    %1981 = vmatprep.subr.bf16.mxu0 %v1383
    %1982 = vmatpush1.bf16.msra.mxu0 %v1382
    %1983 = vmatprep.subr.bf16.mxu0 %v1387
    %1984 = vmatpush1.bf16.msra.mxu0 %v1386
    %1985 = vmatprep.subr.bf16.mxu0 %v1391
    %1986 = vmatpush1.bf16.msra.mxu0 %v1390
    %1987 = vmatprep.subr.bf16.mxu0 %v1395
    %1988 = vmatpush1.bf16.msra.mxu0 %v1394
    %1989 = vmatprep.subr.bf16.mxu0 %v1399
    %1990 = vmatpush1.bf16.msra.mxu0 %v1398
    %1991 = vmatprep.subr.bf16.mxu0 %v1403
    %1992 = vmatpush1.bf16.msra.mxu0 %v1402
    %1993 = vmatprep.subr.bf16.mxu0 %v1407
    %1994 = vmatpush1.bf16.msra.mxu0 %v1406
    %1995 = vmatprep.subr.bf16.mxu0 %v1411
    %1996 = vmatpush1.bf16.msra.mxu0 %v1410
    %1997 = vmatprep.subr.bf16.mxu0 %v1415
    %1998 = vmatpush1.bf16.msra.mxu0 %v1414
    %1999 = vmatprep.subr.bf16.mxu0 %v1419
    %2000 = vmatpush1.bf16.msra.mxu0 %v1418
    %2001 = vmatprep.subr.bf16.mxu0 %v1423
    %2002 = vmatpush1.bf16.msra.mxu0 %v1422
    %2003 = vmatprep.subr.bf16.mxu0 %v1427
    %2004 = vmatpush1.bf16.msra.mxu0 %v1426
    %2005 = vmatprep.subr.bf16.mxu0 %v1431
    %2006 = vmatpush1.bf16.msra.mxu0 %v1430
    %2007 = vmatprep.mubr.bf16.mxu0 %v399
    %2008 = vmatmul.mubr.bf16.gmra.mrb[0].mxu0 %v397
    %v2009 = vpop.f32.mrb[0].mxu0
    %v2010 = vadd.f32 %v1969, %v2009
    %v2011 = vpop.f32.mrb[0].mxu0
    %v2012 = vadd.f32 %v1971, %v2011
    %v2013 = vpop.f32.mrb[0].mxu0
    %v2014 = vpop.f32.mrb[0].mxu0
    %2015 = vdwg.mxu0
    %vm2016 = vcmp.gt.f32.partialorder %v1846, 0.0
    %vm2017 = vcmp.gt.f32.partialorder %v1848, 0.0
    %vm2018 = vcmp.gt.f32.partialorder %v2010, 0.0
    %vm2019 = vcmp.gt.f32.partialorder %v2012, 0.0
    %v2020 = vmin.f32 %v1846, 0.0
    %v2021 = vmin.f32 %v1848, 0.0
    %v2022 = vmin.f32 %v2010, 0.0
    %v2023 = vmin.f32 %v2012, 0.0
    %v2024 = vmul.f32 %v2020, 1.442695
    %v2025 = vpow.pop %v2024
    %v2026 = vmul.f32 %v2021, 1.442695
    %v2027 = vpow.pop %v2026
    %v2028 = vmul.f32 %v2022, 1.442695
    %v2029 = vpow.pop %v2028
    %v2030 = vmul.f32 %v2023, 1.442695
    %v2031 = vpow.pop %v2030
    %v2032 = vsub.f32 %v2025, 1.0
    %v2033 = vsub.f32 %v2027, 1.0
    %v2034 = vsub.f32 %v2029, 1.0
    %v2035 = vsub.f32 %v2031, 1.0
    %v2036 = vsel %vm2016, %v1846, %v2032
    %v2037 = vsel %vm2017, %v1848, %v2033
    %v2038 = vsel %vm2018, %v2010, %v2034
    %v2039 = vsel %vm2019, %v2012, %v2035
    %v2040 = vpack.c.bf16 %v2036, %v2036
    %v2041 = vpack.c.bf16 %v2037, %v2037
    %v2042 = vpack.c.bf16 %v2038, %v2038
    %v2043 = vpack.c.bf16 %v2039, %v2039
    %v2044 = vld [vmem:[%s3] sm:$0xf]
    %v2045 = vld [vmem:[%s3 + $0x4] sm:$0xf]
    %v2046 = vld [vmem:[%s3 + $0x8] sm:$0xf]
    %v2047 = vld [vmem:[%s3 + $0xc] sm:$0xf]
    %v2048 = vld [vmem:[%s3 + $0x10] sm:$0xf]
    %v2049 = vld [vmem:[%s3 + $0x14] sm:$0xf]
    %v2050 = vld [vmem:[%s3 + $0x18] sm:$0xf]
    %v2051 = vld [vmem:[%s3 + $0x1c] sm:$0xf]
    %v2052 = vld [vmem:[%s3 + $0x20] sm:$0xf]
    %v2053 = vld [vmem:[%s3 + $0x24] sm:$0xf]
    %v2054 = vld [vmem:[%s3 + $0x28] sm:$0xf]
    %v2055 = vld [vmem:[%s3 + $0x2c] sm:$0xf]
    %v2056 = vld [vmem:[%s3 + $0x30] sm:$0xf]
    %v2057 = vld [vmem:[%s3 + $0x34] sm:$0xf]
    %v2058 = vld [vmem:[%s3 + $0x38] sm:$0xf]
    %v2059 = vld [vmem:[%s3 + $0x3c] sm:$0xf]
    %v2060 = vld [vmem:[%s3 + $0x40] sm:$0xf]
    %v2061 = vld [vmem:[%s3 + $0x44] sm:$0xf]
    %v2062 = vld [vmem:[%s3 + $0x48] sm:$0xf]
    %v2063 = vld [vmem:[%s3 + $0x4c] sm:$0xf]
    %v2064 = vld [vmem:[%s3 + $0x50] sm:$0xf]
    %v2065 = vld [vmem:[%s3 + $0x54] sm:$0xf]
    %v2066 = vld [vmem:[%s3 + $0x58] sm:$0xf]
    %v2067 = vld [vmem:[%s3 + $0x5c] sm:$0xf]
    %v2068 = vld [vmem:[%s3 + $0x60] sm:$0xf]
    %v2069 = vld [vmem:[%s3 + $0x64] sm:$0xf]
    %v2070 = vld [vmem:[%s3 + $0x68] sm:$0xf]
    %v2071 = vld [vmem:[%s3 + $0x6c] sm:$0xf]
    %v2072 = vld [vmem:[%s3 + $0x70] sm:$0xf]
    %v2073 = vld [vmem:[%s3 + $0x74] sm:$0xf]
    %v2074 = vld [vmem:[%s3 + $0x78] sm:$0xf]
    %v2075 = vld [vmem:[%s3 + $0x7c] sm:$0xf]
    %v2076 = vld [vmem:[%s3 + $0x80] sm:$0xf]
    %v2077 = vld [vmem:[%s3 + $0x84] sm:$0xf]
    %v2078 = vld [vmem:[%s3 + $0x88] sm:$0xf]
    %v2079 = vld [vmem:[%s3 + $0x8c] sm:$0xf]
    %v2080 = vld [vmem:[%s3 + $0x90] sm:$0xf]
    %v2081 = vld [vmem:[%s3 + $0x94] sm:$0xf]
    %v2082 = vld [vmem:[%s3 + $0x98] sm:$0xf]
    %v2083 = vld [vmem:[%s3 + $0x9c] sm:$0xf]
    %v2084 = vld [vmem:[%s3 + $0xa0] sm:$0xf]
    %v2085 = vld [vmem:[%s3 + $0xa4] sm:$0xf]
    %v2086 = vld [vmem:[%s3 + $0xa8] sm:$0xf]
    %v2087 = vld [vmem:[%s3 + $0xac] sm:$0xf]
    %v2088 = vld [vmem:[%s3 + $0xb0] sm:$0xf]
    %v2089 = vld [vmem:[%s3 + $0xb4] sm:$0xf]
    %v2090 = vld [vmem:[%s3 + $0xb8] sm:$0xf]
    %v2091 = vld [vmem:[%s3 + $0xbc] sm:$0xf]
    %v2092 = vld [vmem:[%s3 + $0xc0] sm:$0xf]
    %v2093 = vld [vmem:[%s3 + $0xc4] sm:$0xf]
    %v2094 = vld [vmem:[%s3 + $0xc8] sm:$0xf]
    %v2095 = vld [vmem:[%s3 + $0xcc] sm:$0xf]
    %v2096 = vld [vmem:[%s3 + $0xd0] sm:$0xf]
    %v2097 = vld [vmem:[%s3 + $0xd4] sm:$0xf]
    %v2098 = vld [vmem:[%s3 + $0xd8] sm:$0xf]
    %v2099 = vld [vmem:[%s3 + $0xdc] sm:$0xf]
    %v2100 = vld [vmem:[%s3 + $0xe0] sm:$0xf]
    %v2101 = vld [vmem:[%s3 + $0xe4] sm:$0xf]
    %v2102 = vld [vmem:[%s3 + $0xe8] sm:$0xf]
    %v2103 = vld [vmem:[%s3 + $0xec] sm:$0xf]
    %v2104 = vld [vmem:[%s3 + $0xf0] sm:$0xf]
    %v2105 = vld [vmem:[%s3 + $0xf4] sm:$0xf]
    %v2106 = vld [vmem:[%s3 + $0xf8] sm:$0xf]
    %v2107 = vld [vmem:[%s3 + $0xfc] sm:$0xf]
    %v2108 = vld [vmem:[%s4] sm:$0x1]
    %v2110 = vlaneseq
    %v2111 = vshrl.u32 %v2110, 7
    %v2112 = vsub.s32 0, %v2111
    %v2113 = vrot.slane %v2108, %v2112
    %v2179 = vunpack.c.l.b16 %v2044
    %v2180 = vunpack.c.l.b16 %v2045
    %v2181 = vunpack.c.l.b16 %v2046
    %v2182 = vunpack.c.l.b16 %v2047
    %v2183 = vunpack.c.l.b16 %v2048
    %v2184 = vunpack.c.l.b16 %v2049
    %v2185 = vunpack.c.l.b16 %v2050
    %v2186 = vunpack.c.l.b16 %v2051
    %v2187 = vunpack.c.l.b16 %v2052
    %v2188 = vunpack.c.l.b16 %v2053
    %v2189 = vunpack.c.l.b16 %v2054
    %v2190 = vunpack.c.l.b16 %v2055
    %v2191 = vunpack.c.l.b16 %v2056
    %v2192 = vunpack.c.l.b16 %v2057
    %v2193 = vunpack.c.l.b16 %v2058
    %v2194 = vunpack.c.l.b16 %v2059
    %v2195 = vunpack.c.l.b16 %v2060
    %v2196 = vunpack.c.l.b16 %v2061
    %v2197 = vunpack.c.l.b16 %v2062
    %v2198 = vunpack.c.l.b16 %v2063
    %v2199 = vunpack.c.l.b16 %v2064
    %v2200 = vunpack.c.l.b16 %v2065
    %v2201 = vunpack.c.l.b16 %v2066
    %v2202 = vunpack.c.l.b16 %v2067
    %v2203 = vunpack.c.l.b16 %v2068
    %v2204 = vunpack.c.l.b16 %v2069
    %v2205 = vunpack.c.l.b16 %v2070
    %v2206 = vunpack.c.l.b16 %v2071
    %v2207 = vunpack.c.l.b16 %v2072
    %v2208 = vunpack.c.l.b16 %v2073
    %v2209 = vunpack.c.l.b16 %v2074
    %v2210 = vunpack.c.l.b16 %v2075
    %v2211 = vunpack.c.l.b16 %v2076
    %v2212 = vunpack.c.l.b16 %v2077
    %v2213 = vunpack.c.l.b16 %v2078
    %v2214 = vunpack.c.l.b16 %v2079
    %v2215 = vunpack.c.l.b16 %v2080
    %v2216 = vunpack.c.l.b16 %v2081
    %v2217 = vunpack.c.l.b16 %v2082
    %v2218 = vunpack.c.l.b16 %v2083
    %v2219 = vunpack.c.l.b16 %v2084
    %v2220 = vunpack.c.l.b16 %v2085
    %v2221 = vunpack.c.l.b16 %v2086
    %v2222 = vunpack.c.l.b16 %v2087
    %v2223 = vunpack.c.l.b16 %v2088
    %v2224 = vunpack.c.l.b16 %v2089
    %v2225 = vunpack.c.l.b16 %v2090
    %v2226 = vunpack.c.l.b16 %v2091
    %v2227 = vunpack.c.l.b16 %v2092
    %v2228 = vunpack.c.l.b16 %v2093
    %v2229 = vunpack.c.l.b16 %v2094
    %v2230 = vunpack.c.l.b16 %v2095
    %v2231 = vunpack.c.l.b16 %v2096
    %v2232 = vunpack.c.l.b16 %v2097
    %v2233 = vunpack.c.l.b16 %v2098
    %v2234 = vunpack.c.l.b16 %v2099
    %v2235 = vunpack.c.l.b16 %v2100
    %v2236 = vunpack.c.l.b16 %v2101
    %v2237 = vunpack.c.l.b16 %v2102
    %v2238 = vunpack.c.l.b16 %v2103
    %v2239 = vunpack.c.l.b16 %v2104
    %v2240 = vunpack.c.l.b16 %v2105
    %v2241 = vunpack.c.l.b16 %v2106
    %v2242 = vunpack.c.l.b16 %v2107
    %v2243 = vpack.c.b16 %v2180, %v2179
    %v2244 = vpack.c.b16 %v2182, %v2181
    %v2245 = vpack.c.b16 %v2184, %v2183
    %v2246 = vpack.c.b16 %v2186, %v2185
    %v2247 = vpack.c.b16 %v2188, %v2187
    %v2248 = vpack.c.b16 %v2190, %v2189
    %v2249 = vpack.c.b16 %v2192, %v2191
    %v2250 = vpack.c.b16 %v2194, %v2193
    %v2251 = vpack.c.b16 %v2196, %v2195
    %v2252 = vpack.c.b16 %v2198, %v2197
    %v2253 = vpack.c.b16 %v2200, %v2199
    %v2254 = vpack.c.b16 %v2202, %v2201
    %v2255 = vpack.c.b16 %v2204, %v2203
    %v2256 = vpack.c.b16 %v2206, %v2205
    %v2257 = vpack.c.b16 %v2208, %v2207
    %v2258 = vpack.c.b16 %v2210, %v2209
    %v2259 = vpack.c.b16 %v2212, %v2211
    %v2260 = vpack.c.b16 %v2214, %v2213
    %v2261 = vpack.c.b16 %v2216, %v2215
    %v2262 = vpack.c.b16 %v2218, %v2217
    %v2263 = vpack.c.b16 %v2220, %v2219
    %v2264 = vpack.c.b16 %v2222, %v2221
    %v2265 = vpack.c.b16 %v2224, %v2223
    %v2266 = vpack.c.b16 %v2226, %v2225
    %v2267 = vpack.c.b16 %v2228, %v2227
    %v2268 = vpack.c.b16 %v2230, %v2229
    %v2269 = vpack.c.b16 %v2232, %v2231
    %v2270 = vpack.c.b16 %v2234, %v2233
    %v2271 = vpack.c.b16 %v2236, %v2235
    %v2272 = vpack.c.b16 %v2238, %v2237
    %v2273 = vpack.c.b16 %v2240, %v2239
    %v2274 = vpack.c.b16 %v2242, %v2241
    %2307 = vmatprep.subr.bf16.mxu0 0
    %2308 = vmatpush1.bf16.msra.mxu0 %v2243
    %2309 = vmatprep.subr.bf16.mxu0 0
    %2310 = vmatpush1.bf16.msra.mxu0 %v2244
    %2311 = vmatprep.subr.bf16.mxu0 0
    %2312 = vmatpush1.bf16.msra.mxu0 %v2245
    %2313 = vmatprep.subr.bf16.mxu0 0
    %2314 = vmatpush1.bf16.msra.mxu0 %v2246
    %2315 = vmatprep.subr.bf16.mxu0 0
    %2316 = vmatpush1.bf16.msra.mxu0 %v2247
    %2317 = vmatprep.subr.bf16.mxu0 0
    %2318 = vmatpush1.bf16.msra.mxu0 %v2248
    %2319 = vmatprep.subr.bf16.mxu0 0
    %2320 = vmatpush1.bf16.msra.mxu0 %v2249
    %2321 = vmatprep.subr.bf16.mxu0 0
    %2322 = vmatpush1.bf16.msra.mxu0 %v2250
    %2323 = vmatprep.subr.bf16.mxu0 0
    %2324 = vmatpush1.bf16.msra.mxu0 %v2251
    %2325 = vmatprep.subr.bf16.mxu0 0
    %2326 = vmatpush1.bf16.msra.mxu0 %v2252
    %2327 = vmatprep.subr.bf16.mxu0 0
    %2328 = vmatpush1.bf16.msra.mxu0 %v2253
    %2329 = vmatprep.subr.bf16.mxu0 0
    %2330 = vmatpush1.bf16.msra.mxu0 %v2254
    %2331 = vmatprep.subr.bf16.mxu0 0
    %2332 = vmatpush1.bf16.msra.mxu0 %v2255
    %2333 = vmatprep.subr.bf16.mxu0 0
    %2334 = vmatpush1.bf16.msra.mxu0 %v2256
    %2335 = vmatprep.subr.bf16.mxu0 0
    %2336 = vmatpush1.bf16.msra.mxu0 %v2257
    %2337 = vmatprep.subr.bf16.mxu0 0
    %2338 = vmatpush1.bf16.msra.mxu0 %v2258
    %2339 = vmatprep.mubr.bf16.mxu0 %v2041
    %2340 = vmatmul.mubr.bf16.gmra.mrb[0].mxu0 %v2040
    %v2341 = vpop.f32.mrb[0].mxu0
    %v2342 = vadd.f32 %v2113, %v2341
    %v2343 = vpop.f32.mrb[0].mxu0
    %v2344 = vpop.f32.mrb[0].mxu0
    %v2345 = vpop.f32.mrb[0].mxu0
    %2346 = vdwg.mxu0
    %2347 = vmatprep.subr.bf16.mxu0 0
    %2348 = vmatpush1.bf16.msra.mxu0 %v2259
    %2349 = vmatprep.subr.bf16.mxu0 0
    %2350 = vmatpush1.bf16.msra.mxu0 %v2260
    %2351 = vmatprep.subr.bf16.mxu0 0
    %2352 = vmatpush1.bf16.msra.mxu0 %v2261
    %2353 = vmatprep.subr.bf16.mxu0 0
    %2354 = vmatpush1.bf16.msra.mxu0 %v2262
    %2355 = vmatprep.subr.bf16.mxu0 0
    %2356 = vmatpush1.bf16.msra.mxu0 %v2263
    %2357 = vmatprep.subr.bf16.mxu0 0
    %2358 = vmatpush1.bf16.msra.mxu0 %v2264
    %2359 = vmatprep.subr.bf16.mxu0 0
    %2360 = vmatpush1.bf16.msra.mxu0 %v2265
    %2361 = vmatprep.subr.bf16.mxu0 0
    %2362 = vmatpush1.bf16.msra.mxu0 %v2266
    %2363 = vmatprep.subr.bf16.mxu0 0
    %2364 = vmatpush1.bf16.msra.mxu0 %v2267
    %2365 = vmatprep.subr.bf16.mxu0 0
    %2366 = vmatpush1.bf16.msra.mxu0 %v2268
    %2367 = vmatprep.subr.bf16.mxu0 0
    %2368 = vmatpush1.bf16.msra.mxu0 %v2269
    %2369 = vmatprep.subr.bf16.mxu0 0
    %2370 = vmatpush1.bf16.msra.mxu0 %v2270
    %2371 = vmatprep.subr.bf16.mxu0 0
    %2372 = vmatpush1.bf16.msra.mxu0 %v2271
    %2373 = vmatprep.subr.bf16.mxu0 0
    %2374 = vmatpush1.bf16.msra.mxu0 %v2272
    %2375 = vmatprep.subr.bf16.mxu0 0
    %2376 = vmatpush1.bf16.msra.mxu0 %v2273
    %2377 = vmatprep.subr.bf16.mxu0 0
    %2378 = vmatpush1.bf16.msra.mxu0 %v2274
    %2379 = vmatprep.mubr.bf16.mxu0 %v2043
    %2380 = vmatmul.mubr.bf16.gmra.mrb[0].mxu0 %v2042
    %v2381 = vpop.f32.mrb[0].mxu0
    %v2382 = vadd.f32 %v2342, %v2381
    %v2383 = vpop.f32.mrb[0].mxu0
    %v2384 = vpop.f32.mrb[0].mxu0
    %v2385 = vpop.f32.mrb[0].mxu0
    %2386 = vdwg.mxu0
    %vm2387 = vcmp.gt.f32.partialorder %v2382, 0.0
    %v2388 = vmin.f32 %v2382, 0.0
    %v2389 = vmul.f32 %v2388, 1.442695
    %v2390 = vpow.pop %v2389
    %v2391 = vsub.f32 %v2390, 1.0
    %v2392 = vsel %vm2387, %v2382, %v2391
    %v2393 = vpack.c.bf16 %v2392, %v2392
    %v2394 = vld [vmem:[%s5] sm:$0xf]
    %v2395 = vld [vmem:[%s5 + $0x4] sm:$0xf]
    %v2396 = vld [vmem:[%s5 + $0x8] sm:$0xf]
    %v2397 = vld [vmem:[%s5 + $0xc] sm:$0xf]
    %v2398 = vld [vmem:[%s5 + $0x10] sm:$0xf]
    %v2399 = vld [vmem:[%s5 + $0x14] sm:$0xf]
    %v2400 = vld [vmem:[%s5 + $0x18] sm:$0xf]
    %v2401 = vld [vmem:[%s5 + $0x1c] sm:$0xf]
    %v2402 = vld [vmem:[%s5 + $0x20] sm:$0xf]
    %v2403 = vld [vmem:[%s5 + $0x24] sm:$0xf]
    %v2404 = vld [vmem:[%s5 + $0x28] sm:$0xf]
    %v2405 = vld [vmem:[%s5 + $0x2c] sm:$0xf]
    %v2406 = vld [vmem:[%s5 + $0x30] sm:$0xf]
    %v2407 = vld [vmem:[%s5 + $0x34] sm:$0xf]
    %v2408 = vld [vmem:[%s5 + $0x38] sm:$0xf]
    %v2409 = vld [vmem:[%s5 + $0x3c] sm:$0xf]
    %v2410 = vld [vmem:[%s6] sm:$0x1]
    %v2412 = vlaneseq
    %v2413 = vshrl.u32 %v2412, 7
    %v2414 = vsub.s32 0, %v2413
    %v2415 = vrot.slane %v2410, %v2414
    %v2433 = vunpack.c.l.b16 %v2394
    %v2434 = vunpack.c.l.b16 %v2395
    %v2435 = vunpack.c.l.b16 %v2396
    %v2436 = vunpack.c.l.b16 %v2397
    %v2437 = vunpack.c.l.b16 %v2398
    %v2438 = vunpack.c.l.b16 %v2399
    %v2439 = vunpack.c.l.b16 %v2400
    %v2440 = vunpack.c.l.b16 %v2401
    %v2441 = vunpack.c.l.b16 %v2402
    %v2442 = vunpack.c.l.b16 %v2403
    %v2443 = vunpack.c.l.b16 %v2404
    %v2444 = vunpack.c.l.b16 %v2405
    %v2445 = vunpack.c.l.b16 %v2406
    %v2446 = vunpack.c.l.b16 %v2407
    %v2447 = vunpack.c.l.b16 %v2408
    %v2448 = vunpack.c.l.b16 %v2409
    %v2449 = vpack.c.b16 %v2434, %v2433
    %v2450 = vpack.c.b16 %v2436, %v2435
    %v2451 = vpack.c.b16 %v2438, %v2437
    %v2452 = vpack.c.b16 %v2440, %v2439
    %v2453 = vpack.c.b16 %v2442, %v2441
    %v2454 = vpack.c.b16 %v2444, %v2443
    %v2455 = vpack.c.b16 %v2446, %v2445
    %v2456 = vpack.c.b16 %v2448, %v2447
    %2465 = vmatprep.subr.bf16.mxu0 0
    %2466 = vmatpush1.bf16.msra.mxu0 %v2449
    %2467 = vmatprep.subr.bf16.mxu0 0
    %2468 = vmatpush1.bf16.msra.mxu0 %v2450
    %2469 = vmatprep.subr.bf16.mxu0 0
    %2470 = vmatpush1.bf16.msra.mxu0 %v2451
    %2471 = vmatprep.subr.bf16.mxu0 0
    %2472 = vmatpush1.bf16.msra.mxu0 %v2452
    %2473 = vmatprep.subr.bf16.mxu0 0
    %2474 = vmatpush1.bf16.msra.mxu0 %v2453
    %2475 = vmatprep.subr.bf16.mxu0 0
    %2476 = vmatpush1.bf16.msra.mxu0 %v2454
    %2477 = vmatprep.subr.bf16.mxu0 0
    %2478 = vmatpush1.bf16.msra.mxu0 %v2455
    %2479 = vmatprep.subr.bf16.mxu0 0
    %2480 = vmatpush1.bf16.msra.mxu0 %v2456
    %2481 = vmatprep.subr.bf16.mxu0 0
    %2482 = vmatpush1.bf16.msra.mxu0 0
    %2483 = vmatprep.subr.bf16.mxu0 0
    %2484 = vmatpush1.bf16.msra.mxu0 0
    %2485 = vmatprep.subr.bf16.mxu0 0
    %2486 = vmatpush1.bf16.msra.mxu0 0
    %2487 = vmatprep.subr.bf16.mxu0 0
    %2488 = vmatpush1.bf16.msra.mxu0 0
    %2489 = vmatprep.subr.bf16.mxu0 0
    %2490 = vmatpush1.bf16.msra.mxu0 0
    %2491 = vmatprep.subr.bf16.mxu0 0
    %2492 = vmatpush1.bf16.msra.mxu0 0
    %2493 = vmatprep.subr.bf16.mxu0 0
    %2494 = vmatpush1.bf16.msra.mxu0 0
    %2495 = vmatprep.subr.bf16.mxu0 0
    %2496 = vmatpush1.bf16.msra.mxu0 0
    %2497 = vmatprep.mubr.bf16.mxu0 0
    %2498 = vmatmul.mubr.bf16.gmra.mrb[0].mxu0 %v2393
    %v2499 = vpop.f32.mrb[0].mxu0
    %v2500 = vadd.f32 %v2415, %v2499
    %v2501 = vpop.f32.mrb[0].mxu0
    %v2502 = vpop.f32.mrb[0].mxu0
    %v2503 = vpop.f32.mrb[0].mxu0
    %2504 = vdwg.mxu0
    %vm2505 = vcmp.gt.f32.partialorder %v2500, 0.0
    %v2506 = vmin.f32 %v2500, 0.0
    %v2507 = vmul.f32 %v2506, 1.442695
    %v2508 = vpow.pop %v2507
    %v2509 = vsub.f32 %v2508, 1.0
    %v2510 = vsel %vm2505, %v2500, %v2509
    %v2511 = vpack.c.bf16 %v2510, %v2510
    %v2512 = vld [vmem:[%s7] sm:$0xf]
    %v2513 = vld [vmem:[%s7 + $0x4] sm:$0xf]
    %v2514 = vld [vmem:[%s7 + $0x8] sm:$0xf]
    %v2515 = vld [vmem:[%s7 + $0xc] sm:$0xf]
    %v2516 = vld [vmem:[%s8] sm:$0x1]
    %v2518 = vlaneseq
    %v2519 = vshrl.u32 %v2518, 7
    %v2520 = vsub.s32 0, %v2519
    %v2521 = vrot.slane %v2516, %v2520
    %v2527 = vunpack.c.l.b16 %v2512
    %v2528 = vunpack.c.l.b16 %v2513
    %v2529 = vunpack.c.l.b16 %v2514
    %v2530 = vunpack.c.l.b16 %v2515
    %v2531 = vpack.c.b16 %v2528, %v2527
    %v2532 = vpack.c.b16 %v2530, %v2529
    %vm2535 = vcmask 261120
    %v2537 = vsel %vm2535, %v2511, 0
    %2539 = vmatprep.subr.bf16.mxu0 0
    %2540 = vmatpush1.bf16.msra.mxu0 %v2531
    %2541 = vmatprep.subr.bf16.mxu0 0
    %2542 = vmatpush1.bf16.msra.mxu0 %v2532
    %2543 = vmatprep.subr.bf16.mxu0 0
    %2544 = vmatpush1.bf16.msra.mxu0 0
    %2545 = vmatprep.subr.bf16.mxu0 0
    %2546 = vmatpush1.bf16.msra.mxu0 0
    %2547 = vmatprep.subr.bf16.mxu0 0
    %2548 = vmatpush1.bf16.msra.mxu0 0
    %2549 = vmatprep.subr.bf16.mxu0 0
    %2550 = vmatpush1.bf16.msra.mxu0 0
    %2551 = vmatprep.subr.bf16.mxu0 0
    %2552 = vmatpush1.bf16.msra.mxu0 0
    %2553 = vmatprep.subr.bf16.mxu0 0
    %2554 = vmatpush1.bf16.msra.mxu0 0
    %2555 = vmatprep.subr.bf16.mxu0 0
    %2556 = vmatpush1.bf16.msra.mxu0 0
    %2557 = vmatprep.subr.bf16.mxu0 0
    %2558 = vmatpush1.bf16.msra.mxu0 0
    %2559 = vmatprep.subr.bf16.mxu0 0
    %2560 = vmatpush1.bf16.msra.mxu0 0
    %2561 = vmatprep.subr.bf16.mxu0 0
    %2562 = vmatpush1.bf16.msra.mxu0 0
    %2563 = vmatprep.subr.bf16.mxu0 0
    %2564 = vmatpush1.bf16.msra.mxu0 0
    %2565 = vmatprep.subr.bf16.mxu0 0
    %2566 = vmatpush1.bf16.msra.mxu0 0
    %2567 = vmatprep.subr.bf16.mxu0 0
    %2568 = vmatpush1.bf16.msra.mxu0 0
    %2569 = vmatprep.subr.bf16.mxu0 0
    %2570 = vmatpush1.bf16.msra.mxu0 0
    %2571 = vmatprep.mubr.bf16.mxu0 0
    %2572 = vmatmul.mubr.bf16.gmra.mrb[0].mxu0 %v2537
    %v2573 = vpop.f32.mrb[0].mxu0
    %v2574 = vadd.f32 %v2521, %v2573
    %v2575 = vpop.f32.mrb[0].mxu0
    %v2576 = vpop.f32.mrb[0].mxu0
    %v2577 = vpop.f32.mrb[0].mxu0
    %2578 = vdwg.mxu0
    %vm2579 = vcmp.gt.f32.partialorder %v2574, 0.0
    %v2580 = vmin.f32 %v2574, 0.0
    %v2581 = vmul.f32 %v2580, 1.442695
    %v2582 = vpow.pop %v2581
    %v2583 = vsub.f32 %v2582, 1.0
    %v2584 = vsel %vm2579, %v2574, %v2583
    %v2585 = vpack.c.bf16 %v2584, %v2584
    %v2586 = vld [vmem:[%s9] sm:$0x3]
    %v2587 = vld [vmem:[%s10] sm:$0x3]
    %v2588 = vld [vmem:[%s11] sm:$0xf]
    %v2589 = vpack.c.bf16 %v2586, %v2586
    %v2590 = vld [vmem:[%s12] sm:$0xf]
    %v2591 = vld [vmem:[%s12 + $0x4] sm:$0xf]
    %v2592 = vld [vmem:[%s12 + $0x8] sm:$0xf]
    %v2593 = vld [vmem:[%s12 + $0xc] sm:$0xf]
    %v2598 = vunpack.c.l.b16 %v2590
    %v2599 = vunpack.c.l.b16 %v2591
    %v2600 = vunpack.c.l.b16 %v2592
    %v2601 = vunpack.c.l.b16 %v2593
    %v2602 = vpack.c.b16 %v2599, %v2598
    %v2603 = vpack.c.b16 %v2601, %v2600
    %v2607 = vsel %vm2535, %v2589, 0
    %2609 = vmatprep.subr.bf16.mxu0 0
    %2610 = vmatpush1.bf16.msra.mxu0 %v2602
    %2611 = vmatprep.subr.bf16.mxu0 0
    %2612 = vmatpush1.bf16.msra.mxu0 %v2603
    %2613 = vmatprep.subr.bf16.mxu0 0
    %2614 = vmatpush1.bf16.msra.mxu0 0
    %2615 = vmatprep.subr.bf16.mxu0 0
    %2616 = vmatpush1.bf16.msra.mxu0 0
    %2617 = vmatprep.subr.bf16.mxu0 0
    %2618 = vmatpush1.bf16.msra.mxu0 0
    %2619 = vmatprep.subr.bf16.mxu0 0
    %2620 = vmatpush1.bf16.msra.mxu0 0
    %2621 = vmatprep.subr.bf16.mxu0 0
    %2622 = vmatpush1.bf16.msra.mxu0 0
    %2623 = vmatprep.subr.bf16.mxu0 0
    %2624 = vmatpush1.bf16.msra.mxu0 0
    %2625 = vmatprep.subr.bf16.mxu0 0
    %2626 = vmatpush1.bf16.msra.mxu0 0
    %2627 = vmatprep.subr.bf16.mxu0 0
    %2628 = vmatpush1.bf16.msra.mxu0 0
    %2629 = vmatprep.subr.bf16.mxu0 0
    %2630 = vmatpush1.bf16.msra.mxu0 0
    %2631 = vmatprep.subr.bf16.mxu0 0
    %2632 = vmatpush1.bf16.msra.mxu0 0
    %2633 = vmatprep.subr.bf16.mxu0 0
    %2634 = vmatpush1.bf16.msra.mxu0 0
    %2635 = vmatprep.subr.bf16.mxu0 0
    %2636 = vmatpush1.bf16.msra.mxu0 0
    %2637 = vmatprep.subr.bf16.mxu0 0
    %2638 = vmatpush1.bf16.msra.mxu0 0
    %2639 = vmatprep.subr.bf16.mxu0 0
    %2640 = vmatpush1.bf16.msra.mxu0 0
    %2641 = vmatprep.mubr.bf16.mxu0 0
    %2642 = vmatmul.mubr.bf16.gmra.mrb[0].mxu0 %v2607
    %v2643 = vpop.f32.mrb[0].mxu0
    %v2644 = vadd.f32 0.0, %v2643
    %v2645 = vpop.f32.mrb[0].mxu0
    %v2646 = vpop.f32.mrb[0].mxu0
    %v2647 = vpop.f32.mrb[0].mxu0
    %2648 = vdwg.mxu0
    %vm2649 = vcmask 64512
    %v2651 = vsel %vm2649, %v2585, 0
    %vm2653 = vcmask 1043456
    %v2655 = vsel %vm2653, %v2588, 0
    %2657 = vmatprep.subr.bf16.mxu0 0
    %2658 = vmatpush1.bf16.msra.mxu0 %v2655
    %2659 = vmatprep.subr.bf16.mxu0 0
    %2660 = vmatpush1.bf16.msra.mxu0 0
    %2661 = vmatprep.subr.bf16.mxu0 0
    %2662 = vmatpush1.bf16.msra.mxu0 0
    %2663 = vmatprep.subr.bf16.mxu0 0
    %2664 = vmatpush1.bf16.msra.mxu0 0
    %2665 = vmatprep.subr.bf16.mxu0 0
    %2666 = vmatpush1.bf16.msra.mxu0 0
    %2667 = vmatprep.subr.bf16.mxu0 0
    %2668 = vmatpush1.bf16.msra.mxu0 0
    %2669 = vmatprep.subr.bf16.mxu0 0
    %2670 = vmatpush1.bf16.msra.mxu0 0
    %2671 = vmatprep.subr.bf16.mxu0 0
    %2672 = vmatpush1.bf16.msra.mxu0 0
    %2673 = vmatprep.subr.bf16.mxu0 0
    %2674 = vmatpush1.bf16.msra.mxu0 0
    %2675 = vmatprep.subr.bf16.mxu0 0
    %2676 = vmatpush1.bf16.msra.mxu0 0
    %2677 = vmatprep.subr.bf16.mxu0 0
    %2678 = vmatpush1.bf16.msra.mxu0 0
    %2679 = vmatprep.subr.bf16.mxu0 0
    %2680 = vmatpush1.bf16.msra.mxu0 0
    %2681 = vmatprep.subr.bf16.mxu0 0
    %2682 = vmatpush1.bf16.msra.mxu0 0
    %2683 = vmatprep.subr.bf16.mxu0 0
    %2684 = vmatpush1.bf16.msra.mxu0 0
    %2685 = vmatprep.subr.bf16.mxu0 0
    %2686 = vmatpush1.bf16.msra.mxu0 0
    %2687 = vmatprep.subr.bf16.mxu0 0
    %2688 = vmatpush1.bf16.msra.mxu0 0
    %2689 = vmatprep.mubr.bf16.mxu0 0
    %2690 = vmatmul.mubr.bf16.gmra.mrb[0].mxu0 %v2651
    %v2691 = vpop.f32.mrb[0].mxu0
    %v2692 = vadd.f32 %v2644, %v2691
    %v2693 = vpop.f32.mrb[0].mxu0
    %v2694 = vpop.f32.mrb[0].mxu0
    %v2695 = vpop.f32.mrb[0].mxu0
    %2696 = vdwg.mxu0
    %v2697 = vld [vmem:[%s13] sm:$0x1]
    %v2699 = vlaneseq
    %v2700 = vshrl.u32 %v2699, 7
    %v2701 = vsub.s32 0, %v2700
    %v2702 = vrot.slane %v2697, %v2701
    %v2704 = vadd.f32 %v2692, %v2702
    %v2705 = vxor.u32 %v2704, 2147483648
    %v2706 = vmul.f32 %v2705, 1.442695
    %v2707 = vpow.pop %v2706
    %v2708 = vadd.f32 %v2707, 1.0
    %v2709 = vrcp.pop %v2708
    %v2710 = vmul.f32 1.0, %v2709
    %v2711 = vtanh.pop %v2704
    %2713 = vrot.lane.b32.xlu0 %v2587, 32
    %v2714 = vpop.permute.xlu0 %2713
    %v2716 = vmul.f32 %v2710, %v2714
    %2718 = vrot.lane.b32.xlu0 %v2711, 64
    %v2719 = vpop.permute.xlu0 %2718
    %v2721 = vmul.f32 %v2710, %v2719
    %2723 = vrot.lane.b32.xlu0 %v2721, 32
    %v2724 = vpop.permute.xlu0 %2723
    %v2726 = vadd.f32 %v2716, %v2724
    %v2727 = vtanh.pop %v2726
    %2729 = vrot.lane.b32.xlu0 %v2727, 64
    %v2730 = vpop.permute.xlu0 %2729
    %v2732 = vmul.f32 %v2710, %v2730
    %2734 = vrot.lane.b32.xlu0 %v2732, 32
    %v2735 = vpop.permute.xlu0 %2734
    %vm2737 = vcmask 254976
    %2738 = vst.msk [vmem:[%s17] sm:$0x3] %vm2737, %v2735
    %2740 = vrot.lane.b32.xlu0 %v2726, 96
    %v2741 = vpop.permute.xlu0 %2740
    %2743 = vst.msk [vmem:[%s18] sm:$0x3] %vm2737, %v2741
    %v2744 = vpack.c.bf16 %v2732, %v2732
    %v2745 = vld [vmem:[%s14] sm:$0xf]
    %v2746 = vld [vmem:[%s14 + $0x4] sm:$0xf]
    %v2747 = vld [vmem:[%s14 + $0x8] sm:$0xf]
    %v2748 = vld [vmem:[%s14 + $0xc] sm:$0xf]
    %v2749 = vld [vmem:[%s15] sm:$0x1]
    %v2751 = vlaneseq
    %v2752 = vshrl.u32 %v2751, 7
    %v2753 = vsub.s32 0, %v2752
    %v2754 = vrot.slane %v2749, %v2753
    %2757 = vrot.lane.b32.xlu0 %v2744, 32
    %v2758 = vpop.permute.xlu0 %2757
    %v2763 = vunpack.c.l.b16 %v2745
    %v2764 = vunpack.c.l.b16 %v2746
    %v2765 = vunpack.c.l.b16 %v2747
    %v2766 = vunpack.c.l.b16 %v2748
    %v2767 = vpack.c.b16 %v2764, %v2763
    %v2768 = vpack.c.b16 %v2766, %v2765
    %v2772 = vsel %vm2535, %v2758, 0
    %2774 = vmatprep.subr.bf16.mxu0 0
    %2775 = vmatpush1.bf16.msra.mxu0 %v2767
    %2776 = vmatprep.subr.bf16.mxu0 0
    %2777 = vmatpush1.bf16.msra.mxu0 %v2768
    %2778 = vmatprep.subr.bf16.mxu0 0
    %2779 = vmatpush1.bf16.msra.mxu0 0
    %2780 = vmatprep.subr.bf16.mxu0 0
    %2781 = vmatpush1.bf16.msra.mxu0 0
    %2782 = vmatprep.subr.bf16.mxu0 0
    %2783 = vmatpush1.bf16.msra.mxu0 0
    %2784 = vmatprep.subr.bf16.mxu0 0
    %2785 = vmatpush1.bf16.msra.mxu0 0
    %2786 = vmatprep.subr.bf16.mxu0 0
    %2787 = vmatpush1.bf16.msra.mxu0 0
    %2788 = vmatprep.subr.bf16.mxu0 0
    %2789 = vmatpush1.bf16.msra.mxu0 0
    %2790 = vmatprep.subr.bf16.mxu0 0
    %2791 = vmatpush1.bf16.msra.mxu0 0
    %2792 = vmatprep.subr.bf16.mxu0 0
    %2793 = vmatpush1.bf16.msra.mxu0 0
    %2794 = vmatprep.subr.bf16.mxu0 0
    %2795 = vmatpush1.bf16.msra.mxu0 0
    %2796 = vmatprep.subr.bf16.mxu0 0
    %2797 = vmatpush1.bf16.msra.mxu0 0
    %2798 = vmatprep.subr.bf16.mxu0 0
    %2799 = vmatpush1.bf16.msra.mxu0 0
    %2800 = vmatprep.subr.bf16.mxu0 0
    %2801 = vmatpush1.bf16.msra.mxu0 0
    %2802 = vmatprep.subr.bf16.mxu0 0
    %2803 = vmatpush1.bf16.msra.mxu0 0
    %2804 = vmatprep.subr.bf16.mxu0 0
    %2805 = vmatpush1.bf16.msra.mxu0 0
    %2806 = vmatprep.mubr.bf16.mxu0 0
    %2807 = vmatmul.mubr.bf16.gmra.mrb[0].mxu0 %v2772
    %v2808 = vpop.f32.mrb[0].mxu0
    %v2809 = vadd.f32 %v2754, %v2808
    %v2810 = vpop.f32.mrb[0].mxu0
    %v2811 = vpop.f32.mrb[0].mxu0
    %v2812 = vpop.f32.mrb[0].mxu0
    %2813 = vdwg.mxu0
    %vm2814 = vcmask 50176
    %2815 = vst.msk [vmem:[%s16] sm:$0x3] %vm2814, %v2809
    // Predicated region
    $region70: #{_agent_forward_impl.1} parent=1 // pred_check
      _
    $region71: #{_agent_forward_impl.1} parent=1 // pred_check_branch
      %2817 = sbr.rel (0) target = $region73
    $region72: #{_agent_forward_impl.1} parent=1 // pred_region
      _
    $region73: #{_agent_forward_impl.1} parent=1 // pred_fallthru
      _
    // Predicated region
    $region74: #{_agent_forward_impl.1} parent=1 // pred_check
      _
    $region75: #{_agent_forward_impl.1} parent=1 // pred_check_branch
      %2819 = sbr.rel (0) target = $region77
    $region76: #{_agent_forward_impl.1} parent=1 // pred_region
      _
    $region77: #{_agent_forward_impl.1} parent=1 // pred_fallthru
      _
    // Predicated region
    $region78: #{_agent_forward_impl.1} parent=1 // pred_check
      _
    $region79: #{_agent_forward_impl.1} parent=1 // pred_check_branch
      %2821 = sbr.rel (0) target = $region81
    $region80: #{_agent_forward_impl.1} parent=1 // pred_region
      _
    $region81: #{_agent_forward_impl.1} parent=1 // pred_fallthru
      _
    // Predicated region
    $region82: #{_agent_forward_impl.1} parent=1 // pred_check
      _
    $region83: #{_agent_forward_impl.1} parent=1 // pred_check_branch
      %2823 = sbr.rel (0) target = $region85
    $region84: #{_agent_forward_impl.1} parent=1 // pred_region
      _
    $region85: #{_agent_forward_impl.1} parent=1 // pred_fallthru
      _
    // Predicated region
    $region86: #{_agent_forward_impl.1} parent=1 // pred_check
      _
    $region87: #{_agent_forward_impl.1} parent=1 // pred_check_branch
      %2825 = sbr.rel (0) target = $region89
    $region88: #{_agent_forward_impl.1} parent=1 // pred_region
      _
    $region89: #{_agent_forward_impl.1} parent=1 // pred_fallthru
      _
    // Predicated region
    $region90: #{_agent_forward_impl.1} parent=1 // pred_check
      _
    $region91: #{_agent_forward_impl.1} parent=1 // pred_check_branch
      %2827 = sbr.rel (0) target = $region93
    $region92: #{_agent_forward_impl.1} parent=1 // pred_region
      _
    $region93: #{_agent_forward_impl.1} parent=1 // pred_fallthru
      _
    %2828 = vsyncpa [#allocation3], 1

</llo_original>
